<compile_context>
chip_gen: v5e
topology: v5e:2x2
jax: 0.10.0
libtpu: 0.0.40
codegen_flags: <defaults>
</compile_context>

<pallas_src>
import jax
import jax.numpy as jnp
import numpy as np
from jax.experimental import pallas as pl
from jax.experimental.pallas import tpu as pltpu


# ---------------------------------------------------------------------------
# Exact (erf-based) GELU, matching nn.GELU() default.
# erf via Abramowitz & Stegun 7.1.26 polynomial (|err| < 1.5e-7); the internal divide is
# moved to the EUP with pl.reciprocal(approx=True).
# TODO(synk): switch to lax.erf if/when the erf primitive lowering is guaranteed on TPU Pallas.
# ---------------------------------------------------------------------------
def _erf(z):
    a1, a2, a3, a4, a5 = 0.254829592, -0.284496736, 1.421413741, -1.453152027, 1.061405429
    p = 0.3275911
    az = jnp.abs(z)
    t = pl.reciprocal(1.0 + p * az, approx=True)          # EUP, not VPU divide
    poly = ((((a5 * t + a4) * t + a3) * t + a2) * t + a1) * t
    y = 1.0 - poly * jnp.exp(-az * az)
    return jnp.where(z >= 0, y, -y)


def _gelu_exact(x):
    return 0.5 * x * (1.0 + _erf(x * 0.7071067811865476))


# ---------------------------------------------------------------------------
# Kernel factory: one grid step = `Bt` full sequences (rows flattened to (Bt*S, H)).
# ---------------------------------------------------------------------------
def _make_kernel(nh, hd, Bt, S, matmul_dtype):
    H = nh * hd
    R = Bt * S
    scale = 1.0 / float(np.sqrt(hd))
    eps = 1e-5                                   # nn.LayerNorm default

    def layer_norm(v, g, b):
        # Two-pass (centered) variance: matches PyTorch and avoids E[x^2]-mean^2 cancellation.
        mean = jnp.mean(v, axis=-1, keepdims=True)
        cent = v - mean
        var = jnp.mean(cent * cent, axis=-1, keepdims=True)
        return cent * jax.lax.rsqrt(var + eps) * g + b

    def kernel(
        x_ref,                                   # (R, H) f32 rows (Bt sequences)
        ln1_g_ref, ln1_b_ref,                    # (1, H)
        wq_ref, bq_ref,                          # (H, H), (1, H)   packed over heads
        wk_ref, bk_ref,
        wv_ref, bv_ref,
        wo_ref, bo_ref,                          # (H, H), (1, H)
        ln2_g_ref, ln2_b_ref,                    # (1, H)
        w1_ref, b1_ref,                          # (H, I), (1, I)
        w2_ref, b2_ref,                          # (I, H), (1, H)
        out_ref,                                 # (R, H)
    ):
        x = x_ref[...]                           # (R, H) f32

        # ---------------- Multi-head self-attention on LN1(x) ----------------
        h1 = layer_norm(x, ln1_g_ref[...], ln1_b_ref[...]).astype(matmul_dtype)

        # Lane-dense packed projections: 3 matmuls for all heads at once.
        q = jnp.dot(h1, wq_ref[...], preferred_element_type=jnp.float32) + bq_ref[...]
        k = jnp.dot(h1, wk_ref[...], preferred_element_type=jnp.float32) + bk_ref[...]
        v = jnp.dot(h1, wv_ref[...], preferred_element_type=jnp.float32) + bv_ref[...]

        ctx_heads = []
        for h in range(nh):                      # static unroll; nh is small (4)
            sl = slice(h * hd, (h + 1) * hd)
            qh = q[:, sl].reshape(Bt, S, hd)
            kh = k[:, sl].reshape(Bt, S, hd)
            vh = v[:, sl].reshape(Bt, S, hd)

            s = jnp.einsum("bqd,bkd->bqk", qh, kh,
                           preferred_element_type=jnp.float32) * scale        # (Bt, S, S)
            s = s - jnp.max(s, axis=-1, keepdims=True)                        # stable softmax
            p = jnp.exp(s)
            p = p * pl.reciprocal(jnp.sum(p, axis=-1, keepdims=True), approx=True)

            ctx_heads.append(
                jnp.einsum("bqk,bkd->bqd",
                           p.astype(matmul_dtype), vh.astype(matmul_dtype),
                           preferred_element_type=jnp.float32))               # (Bt, S, hd)

        # Lane-contiguous context + ONE output-projection matmul (no per-head accumulation).
        ctx = jnp.concatenate(ctx_heads, axis=-1).reshape(R, H).astype(matmul_dtype)
        attn = jnp.dot(ctx, wo_ref[...], preferred_element_type=jnp.float32) + bo_ref[...]

        x1 = x + attn                                                         # residual 1

        # ---------------- Feed-forward on LN2(x1) ----------------
        h2 = layer_norm(x1, ln2_g_ref[...], ln2_b_ref[...]).astype(matmul_dtype)
        f = jnp.dot(h2, w1_ref[...], preferred_element_type=jnp.float32) + b1_ref[...]
        f = _gelu_exact(f).astype(matmul_dtype)
        f = jnp.dot(f, w2_ref[...], preferred_element_type=jnp.float32) + b2_ref[...]
        # TODO(synk): nn.Dropout is identity in eval mode; stochastic dropout intentionally omitted.

        out_ref[...] = (x1 + f).astype(out_ref.dtype)                         # residual 2

    return kernel


# ---------------------------------------------------------------------------
# Wrapper: pack per-head weights to lane-dense matrices, grid over batch blocks,
# weights VMEM-resident via constant index maps.
# ---------------------------------------------------------------------------
def encoder_layer_forward(x, params, *, batch_block=None, matmul_dtype=jnp.float32):
    (ln1_g, ln1_b, wq, bq, wk, bk, wv, bv, wo, bo,
     ln2_g, ln2_b, w1, b1, w2, b2) = params

    B, S, H = x.shape
    nh, _, hd = wq.shape
    I = w1.shape[1]
    assert nh * hd == H

    # ---- repack per-head projection weights into lane-dense matrices (wrapper-side, XLA) ----
    # wq_p[:, h*hd:(h+1)*hd] == wq[h]   (same for k, v);   wo_p[h*hd:(h+1)*hd, :] == wo[h]
    wq_p = jnp.transpose(wq, (1, 0, 2)).reshape(H, nh * hd).astype(matmul_dtype)
    wk_p = jnp.transpose(wk, (1, 0, 2)).reshape(H, nh * hd).astype(matmul_dtype)
    wv_p = jnp.transpose(wv, (1, 0, 2)).reshape(H, nh * hd).astype(matmul_dtype)
    wo_p = wo.reshape(nh * hd, H).astype(matmul_dtype)
    bq_p = bq.reshape(1, nh * hd).astype(jnp.float32)
    bk_p = bk.reshape(1, nh * hd).astype(jnp.float32)
    bv_p = bv.reshape(1, nh * hd).astype(jnp.float32)
    w1_c = w1.astype(matmul_dtype)
    w2_c = w2.astype(matmul_dtype)

    # ---- choose how many whole sequences go into one grid step (~256 rows target) ----
    if batch_block is None:
        batch_block = min(B, max(1, 256 // S))
    while B % batch_block != 0:
        batch_block -= 1
    nblk = B // batch_block
    R = batch_block * S

    xf = x.reshape(B * S, H)                       # rows flattened; kernel sees (R, H) slabs

    def const(shape):
        nd = len(shape)
        return pl.BlockSpec(shape, lambda i, _nd=nd: (0,) * _nd)

    kernel = _make_kernel(nh, hd, batch_block, S, matmul_dtype)

    grid_spec = pltpu.PrefetchScalarGridSpec(
        num_scalar_prefetch=0,
        grid=(nblk,),
        in_specs=[
            pl.BlockSpec((R, H), lambda i: (i, 0)),          # x rows: batch_block sequences / step
            const((1, H)), const((1, H)),                    # LN1 gamma / beta
            const((H, H)), const((1, H)),                    # packed Wq / bq
            const((H, H)), const((1, H)),                    # packed Wk / bk
            const((H, H)), const((1, H)),                    # packed Wv / bv
            const((H, H)), const((1, H)),                    # Wo / bo
            const((1, H)), const((1, H)),                    # LN2 gamma / beta
            const((H, I)), const((1, I)),                    # FFN W1 / b1
            const((I, H)), const((1, H)),                    # FFN W2 / b2
        ],
        out_specs=pl.BlockSpec((R, H), lambda i: (i, 0)),
    )

    out_flat = pl.pallas_call(
        kernel,
        out_shape=jax.ShapeDtypeStruct((B * S, H), jnp.float32),
        grid_spec=grid_spec,
        compiler_params=pltpu.CompilerParams(
            dimension_semantics=("parallel",),               # megacore / v7x 2-TC sharding
            vmem_limit_bytes=48 * 1024 * 1024,
        ),
    )(xf, ln1_g, ln1_b, wq_p, bq_p, wk_p, bk_p, wv_p, bv_p, wo_p, bo,
      ln2_g, ln2_b, w1_c, b1, w2_c, b2)

    return out_flat.reshape(B, S, H)


# ---------------------------------------------------------------------------
# Pure-JAX reference (mirrors the PyTorch module, eval mode).
# ---------------------------------------------------------------------------
def reference_forward(x, params):
    (ln1_g, ln1_b, wq, bq, wk, bk, wv, bv, wo, bo,
     ln2_g, ln2_b, w1, b1, w2, b2) = params
    eps = 1e-5
    hp = jax.lax.Precision.HIGHEST

    def layer_norm(v, g, b):
        mean = jnp.mean(v, axis=-1, keepdims=True)
        var = jnp.mean((v - mean) ** 2, axis=-1, keepdims=True)
        return (v - mean) / jnp.sqrt(var + eps) * g + b

    nh, _, hd = wq.shape
    h1 = layer_norm(x, ln1_g, ln1_b)
    ctxs = []
    for i in range(nh):
        q = jnp.einsum("bsh,hd->bsd", h1, wq[i], precision=hp) + bq[i]
        k = jnp.einsum("bsh,hd->bsd", h1, wk[i], precision=hp) + bk[i]
        v = jnp.einsum("bsh,hd->bsd", h1, wv[i], precision=hp) + bv[i]
        scores = jnp.einsum("bqd,bkd->bqk", q, k, precision=hp) / np.sqrt(hd)
        w = jax.nn.softmax(scores, axis=-1)
        ctxs.append(jnp.einsum("bqk,bkd->bqd", w, v, precision=hp))
    ctx = jnp.concatenate(ctxs, axis=-1)
    wo_full = wo.reshape(nh * hd, -1)
    attn = jnp.einsum("bsh,hd->bsd", ctx, wo_full, precision=hp) + bo
    x = x + attn
    h2 = layer_norm(x, ln2_g, ln2_b)
    f = jnp.einsum("bsh,hi->bsi", h2, w1, precision=hp) + b1
    f = jax.nn.gelu(f, approximate=False)
    f = jnp.einsum("bsi,ih->bsh", f, w2, precision=hp) + b2
    return x + f


if __name__ == "__main__":
    # Small config consistent with the module: hidden=32, 4 heads, intermediate=128.
    B, S = 2, 8
    hidden_size = 32
    num_heads = 4
    head_dim = hidden_size // num_heads
    intermediate_size = 128

    key = jax.random.PRNGKey(0)
    ks = jax.random.split(key, 16)

    def rnd(k, shape, scale=1.0):
        return (scale * jax.random.normal(k, shape)).astype(jnp.float32)

    x = rnd(ks[0], (B, S, hidden_size))
    ln1_g = (1.0 + rnd(ks[1], (1, hidden_size), 0.1)).astype(jnp.float32)
    ln1_b = rnd(ks[2], (1, hidden_size), 0.1)
    wq = rnd(ks[3], (num_heads, hidden_size, head_dim), hidden_size ** -0.5)
    bq = rnd(ks[4], (num_heads, head_dim), 0.1)
    wk = rnd(ks[5], (num_heads, hidden_size, head_dim), hidden_size ** -0.5)
    bk = rnd(ks[6], (num_heads, head_dim), 0.1)
    wv = rnd(ks[7], (num_heads, hidden_size, head_dim), hidden_size ** -0.5)
    bv = rnd(ks[8], (num_heads, head_dim), 0.1)
    wo = rnd(ks[9], (num_heads, head_dim, hidden_size), hidden_size ** -0.5)
    bo = rnd(ks[10], (1, hidden_size), 0.1)
    ln2_g = (1.0 + rnd(ks[11], (1, hidden_size), 0.1)).astype(jnp.float32)
    ln2_b = rnd(ks[12], (1, hidden_size), 0.1)
    w1 = rnd(ks[13], (hidden_size, intermediate_size), hidden_size ** -0.5)
    b1 = rnd(ks[14], (1, intermediate_size), 0.1)
    w2 = rnd(ks[15], (intermediate_size, hidden_size), intermediate_size ** -0.5)
    b2 = jnp.zeros((1, hidden_size), jnp.float32)

    params = (ln1_g, ln1_b, wq, bq, wk, bk, wv, bv, wo, bo,
              ln2_g, ln2_b, w1, b1, w2, b2)

    out = encoder_layer_forward(x, params)          # f32 matmuls; use matmul_dtype=jnp.bfloat16 on v6e/v7x
    out = jax.block_until_ready(out)

    ref = reference_forward(x, params)
    # Tolerance accounts for pl.reciprocal(approx=True) in softmax / erf (EUP approximate rcp).
    np.testing.assert_allclose(np.asarray(out), np.asarray(ref), rtol=5e-3, atol=5e-3)

    print("KERNEL_OK")
</pallas_src>

<mosaic_0001>
module attributes {stable_mosaic.version = 11 : i64} {
  func.func @kernel(%arg0: i32, %arg1: memref<16x32xf32, #tpu.memory_space<vmem>>, %arg2: memref<1x32xf32, #tpu.memory_space<vmem>>, %arg3: memref<1x32xf32, #tpu.memory_space<vmem>>, %arg4: memref<32x32xf32, #tpu.memory_space<vmem>>, %arg5: memref<1x32xf32, #tpu.memory_space<vmem>>, %arg6: memref<32x32xf32, #tpu.memory_space<vmem>>, %arg7: memref<1x32xf32, #tpu.memory_space<vmem>>, %arg8: memref<32x32xf32, #tpu.memory_space<vmem>>, %arg9: memref<1x32xf32, #tpu.memory_space<vmem>>, %arg10: memref<32x32xf32, #tpu.memory_space<vmem>>, %arg11: memref<1x32xf32, #tpu.memory_space<vmem>>, %arg12: memref<1x32xf32, #tpu.memory_space<vmem>>, %arg13: memref<1x32xf32, #tpu.memory_space<vmem>>, %arg14: memref<32x128xf32, #tpu.memory_space<vmem>>, %arg15: memref<1x128xf32, #tpu.memory_space<vmem>>, %arg16: memref<128x32xf32, #tpu.memory_space<vmem>>, %arg17: memref<1x32xf32, #tpu.memory_space<vmem>>, %arg18: memref<16x32xf32, #tpu.memory_space<vmem>>) attributes {dimension_semantics = [#tpu.dimension_semantics<parallel>], iteration_bounds = array<i64: 1>, scalar_prefetch = 0 : i64, scratch_operands = 0 : i64, tpu.core_type = #tpu.core_type<tc>, window_params = [{transform_indices = @transform_0, window_bounds = array<i64: 16, 32>}, {pipeline_mode = #tpu.pipeline_mode<synchronous>, transform_indices = @transform_1, window_bounds = array<i64: 1, 32>}, {pipeline_mode = #tpu.pipeline_mode<synchronous>, transform_indices = @transform_2, window_bounds = array<i64: 1, 32>}, {pipeline_mode = #tpu.pipeline_mode<synchronous>, transform_indices = @transform_3, window_bounds = array<i64: 32, 32>}, {pipeline_mode = #tpu.pipeline_mode<synchronous>, transform_indices = @transform_4, window_bounds = array<i64: 1, 32>}, {pipeline_mode = #tpu.pipeline_mode<synchronous>, transform_indices = @transform_5, window_bounds = array<i64: 32, 32>}, {pipeline_mode = #tpu.pipeline_mode<synchronous>, transform_indices = @transform_6, window_bounds = array<i64: 1, 32>}, {pipeline_mode = #tpu.pipeline_mode<synchronous>, transform_indices = @transform_7, window_bounds = array<i64: 32, 32>}, {pipeline_mode = #tpu.pipeline_mode<synchronous>, transform_indices = @transform_8, window_bounds = array<i64: 1, 32>}, {pipeline_mode = #tpu.pipeline_mode<synchronous>, transform_indices = @transform_9, window_bounds = array<i64: 32, 32>}, {pipeline_mode = #tpu.pipeline_mode<synchronous>, transform_indices = @transform_10, window_bounds = array<i64: 1, 32>}, {pipeline_mode = #tpu.pipeline_mode<synchronous>, transform_indices = @transform_11, window_bounds = array<i64: 1, 32>}, {pipeline_mode = #tpu.pipeline_mode<synchronous>, transform_indices = @transform_12, window_bounds = array<i64: 1, 32>}, {pipeline_mode = #tpu.pipeline_mode<synchronous>, transform_indices = @transform_13, window_bounds = array<i64: 32, 128>}, {pipeline_mode = #tpu.pipeline_mode<synchronous>, transform_indices = @transform_14, window_bounds = array<i64: 1, 128>}, {pipeline_mode = #tpu.pipeline_mode<synchronous>, transform_indices = @transform_15, window_bounds = array<i64: 128, 32>}, {pipeline_mode = #tpu.pipeline_mode<synchronous>, transform_indices = @transform_16, window_bounds = array<i64: 1, 32>}, {transform_indices = @transform_17, window_bounds = array<i64: 16, 32>}]} {
    %c0 = arith.constant 0 : index
    %c0_0 = arith.constant 0 : index
    %0 = vector.load %arg1[%c0, %c0_0] : memref<16x32xf32, #tpu.memory_space<vmem>>, vector<16x32xf32>
    %c0_1 = arith.constant 0 : index
    %c0_2 = arith.constant 0 : index
    %1 = vector.load %arg2[%c0_1, %c0_2] : memref<1x32xf32, #tpu.memory_space<vmem>>, vector<1x32xf32>
    %c0_3 = arith.constant 0 : index
    %c0_4 = arith.constant 0 : index
    %2 = vector.load %arg3[%c0_3, %c0_4] : memref<1x32xf32, #tpu.memory_space<vmem>>, vector<1x32xf32>
    %cst = arith.constant dense<0.000000e+00> : vector<16xf32>
    %3 = vector.multi_reduction <add>, %0, %cst [1] : vector<16x32xf32> to vector<16xf32>
    %4 = vector.shape_cast %3 : vector<16xf32> to vector<16x1xf32>
    %cst_5 = arith.constant 3.200000e+01 : f32
    %5 = vector.broadcast %cst_5 : f32 to vector<16x1xf32>
    %6 = arith.divf %4, %5 : vector<16x1xf32>
    %7 = vector.broadcast %6 : vector<16x1xf32> to vector<16x32xf32>
    %8 = arith.subf %0, %7 : vector<16x32xf32>
    %9 = arith.mulf %8, %8 : vector<16x32xf32>
    %cst_6 = arith.constant dense<0.000000e+00> : vector<16xf32>
    %10 = vector.multi_reduction <add>, %9, %cst_6 [1] : vector<16x32xf32> to vector<16xf32>
    %11 = vector.shape_cast %10 : vector<16xf32> to vector<16x1xf32>
    %cst_7 = arith.constant 3.200000e+01 : f32
    %12 = vector.broadcast %cst_7 : f32 to vector<16x1xf32>
    %13 = arith.divf %11, %12 : vector<16x1xf32>
    %cst_8 = arith.constant 9.99999974E-6 : f32
    %14 = vector.broadcast %cst_8 : f32 to vector<16x1xf32>
    %15 = arith.addf %13, %14 : vector<16x1xf32>
    %16 = math.rsqrt %15 : vector<16x1xf32>
    %17 = vector.broadcast %16 : vector<16x1xf32> to vector<16x32xf32>
    %18 = arith.mulf %8, %17 : vector<16x32xf32>
    %19 = vector.broadcast %1 : vector<1x32xf32> to vector<16x32xf32>
    %20 = arith.mulf %18, %19 : vector<16x32xf32>
    %21 = vector.broadcast %2 : vector<1x32xf32> to vector<16x32xf32>
    %22 = arith.addf %20, %21 : vector<16x32xf32>
    %c0_9 = arith.constant 0 : index
    %c0_10 = arith.constant 0 : index
    %23 = vector.load %arg4[%c0_9, %c0_10] : memref<32x32xf32, #tpu.memory_space<vmem>>, vector<32x32xf32>
    %cst_11 = arith.constant dense<0.000000e+00> : vector<16x32xf32>
    %24 = tpu.matmul %22, %23, %cst_11 {dimension_numbers = #tpu.dot_dimension_numbers<[1], [0], [0], [1], [0, 0, 1, 1], [], []>} : vector<16x32xf32>, vector<32x32xf32>, vector<16x32xf32> -> vector<16x32xf32>
    %c0_12 = arith.constant 0 : index
    %c0_13 = arith.constant 0 : index
    %25 = vector.load %arg5[%c0_12, %c0_13] : memref<1x32xf32, #tpu.memory_space<vmem>>, vector<1x32xf32>
    %26 = vector.broadcast %25 : vector<1x32xf32> to vector<16x32xf32>
    %27 = arith.addf %24, %26 : vector<16x32xf32>
    %c0_14 = arith.constant 0 : index
    %c0_15 = arith.constant 0 : index
    %28 = vector.load %arg6[%c0_14, %c0_15] : memref<32x32xf32, #tpu.memory_space<vmem>>, vector<32x32xf32>
    %cst_16 = arith.constant dense<0.000000e+00> : vector<16x32xf32>
    %29 = tpu.matmul %22, %28, %cst_16 {dimension_numbers = #tpu.dot_dimension_numbers<[1], [0], [0], [1], [0, 0, 1, 1], [], []>} : vector<16x32xf32>, vector<32x32xf32>, vector<16x32xf32> -> vector<16x32xf32>
    %c0_17 = arith.constant 0 : index
    %c0_18 = arith.constant 0 : index
    %30 = vector.load %arg7[%c0_17, %c0_18] : memref<1x32xf32, #tpu.memory_space<vmem>>, vector<1x32xf32>
    %31 = vector.broadcast %30 : vector<1x32xf32> to vector<16x32xf32>
    %32 = arith.addf %29, %31 : vector<16x32xf32>
    %c0_19 = arith.constant 0 : index
    %c0_20 = arith.constant 0 : index
    %33 = vector.load %arg8[%c0_19, %c0_20] : memref<32x32xf32, #tpu.memory_space<vmem>>, vector<32x32xf32>
    %cst_21 = arith.constant dense<0.000000e+00> : vector<16x32xf32>
    %34 = tpu.matmul %22, %33, %cst_21 {dimension_numbers = #tpu.dot_dimension_numbers<[1], [0], [0], [1], [0, 0, 1, 1], [], []>} : vector<16x32xf32>, vector<32x32xf32>, vector<16x32xf32> -> vector<16x32xf32>
    %c0_22 = arith.constant 0 : index
    %c0_23 = arith.constant 0 : index
    %35 = vector.load %arg9[%c0_22, %c0_23] : memref<1x32xf32, #tpu.memory_space<vmem>>, vector<1x32xf32>
    %36 = vector.broadcast %35 : vector<1x32xf32> to vector<16x32xf32>
    %37 = arith.addf %34, %36 : vector<16x32xf32>
    %38 = vector.extract_strided_slice %27 {offsets = [0, 0], sizes = [16, 8], strides = [1, 1]} : vector<16x32xf32> to vector<16x8xf32>
    %39 = vector.shape_cast %38 : vector<16x8xf32> to vector<2x8x8xf32>
    %40 = vector.extract_strided_slice %32 {offsets = [0, 0], sizes = [16, 8], strides = [1, 1]} : vector<16x32xf32> to vector<16x8xf32>
    %41 = vector.shape_cast %40 : vector<16x8xf32> to vector<2x8x8xf32>
    %42 = vector.extract_strided_slice %37 {offsets = [0, 0], sizes = [16, 8], strides = [1, 1]} : vector<16x32xf32> to vector<16x8xf32>
    %43 = vector.shape_cast %42 : vector<16x8xf32> to vector<2x8x8xf32>
    "tpu.trace_start"() <{level = 10 : i32, message = "bqd,bkd->bqk"}> : () -> ()
    %cst_24 = arith.constant dense<0.000000e+00> : vector<2x8x8xf32>
    %44 = tpu.matmul %39, %41, %cst_24 {dimension_numbers = #tpu.dot_dimension_numbers<[2], [2], [1], [1], [0, 0, 0, 1, 1, 1], [0], [0]>} : vector<2x8x8xf32>, vector<2x8x8xf32>, vector<2x8x8xf32> -> vector<2x8x8xf32>
    "tpu.trace_stop"() : () -> ()
    %cst_25 = arith.constant 0.353553385 : f32
    %45 = vector.broadcast %cst_25 : f32 to vector<2x8x8xf32>
    %46 = arith.mulf %44, %45 : vector<2x8x8xf32>
    %cst_26 = arith.constant dense<0xFF800000> : vector<2x8xf32>
    %47 = vector.multi_reduction <maximumf>, %46, %cst_26 [2] : vector<2x8x8xf32> to vector<2x8xf32>
    %48 = vector.shape_cast %47 : vector<2x8xf32> to vector<2x8x1xf32>
    %49 = vector.broadcast %48 : vector<2x8x1xf32> to vector<2x8x8xf32>
    %50 = arith.subf %46, %49 : vector<2x8x8xf32>
    %51 = math.exp %50 : vector<2x8x8xf32>
    %cst_27 = arith.constant dense<0.000000e+00> : vector<2x8xf32>
    %52 = vector.multi_reduction <add>, %51, %cst_27 [2] : vector<2x8x8xf32> to vector<2x8xf32>
    %53 = vector.shape_cast %52 : vector<2x8xf32> to vector<2x8x1xf32>
    %54 = tpu.reciprocal %53 {approx = true} : vector<2x8x1xf32> -> vector<2x8x1xf32>
    %55 = vector.broadcast %54 : vector<2x8x1xf32> to vector<2x8x8xf32>
    %56 = arith.mulf %51, %55 : vector<2x8x8xf32>
    "tpu.trace_start"() <{level = 10 : i32, message = "bqk,bkd->bqd"}> : () -> ()
    %cst_28 = arith.constant dense<0.000000e+00> : vector<2x8x8xf32>
    %57 = tpu.matmul %56, %43, %cst_28 {dimension_numbers = #tpu.dot_dimension_numbers<[2], [1], [1], [2], [0, 0, 0, 1, 1, 2], [0], [0]>} : vector<2x8x8xf32>, vector<2x8x8xf32>, vector<2x8x8xf32> -> vector<2x8x8xf32>
    "tpu.trace_stop"() : () -> ()
    %58 = vector.extract_strided_slice %27 {offsets = [0, 8], sizes = [16, 8], strides = [1, 1]} : vector<16x32xf32> to vector<16x8xf32>
    %59 = vector.shape_cast %58 : vector<16x8xf32> to vector<2x8x8xf32>
    %60 = vector.extract_strided_slice %32 {offsets = [0, 8], sizes = [16, 8], strides = [1, 1]} : vector<16x32xf32> to vector<16x8xf32>
    %61 = vector.shape_cast %60 : vector<16x8xf32> to vector<2x8x8xf32>
    %62 = vector.extract_strided_slice %37 {offsets = [0, 8], sizes = [16, 8], strides = [1, 1]} : vector<16x32xf32> to vector<16x8xf32>
    %63 = vector.shape_cast %62 : vector<16x8xf32> to vector<2x8x8xf32>
    "tpu.trace_start"() <{level = 10 : i32, message = "bqd,bkd->bqk"}> : () -> ()
    %cst_29 = arith.constant dense<0.000000e+00> : vector<2x8x8xf32>
    %64 = tpu.matmul %59, %61, %cst_29 {dimension_numbers = #tpu.dot_dimension_numbers<[2], [2], [1], [1], [0, 0, 0, 1, 1, 1], [0], [0]>} : vector<2x8x8xf32>, vector<2x8x8xf32>, vector<2x8x8xf32> -> vector<2x8x8xf32>
    "tpu.trace_stop"() : () -> ()
    %cst_30 = arith.constant 0.353553385 : f32
    %65 = vector.broadcast %cst_30 : f32 to vector<2x8x8xf32>
    %66 = arith.mulf %64, %65 : vector<2x8x8xf32>
    %cst_31 = arith.constant dense<0xFF800000> : vector<2x8xf32>
    %67 = vector.multi_reduction <maximumf>, %66, %cst_31 [2] : vector<2x8x8xf32> to vector<2x8xf32>
    %68 = vector.shape_cast %67 : vector<2x8xf32> to vector<2x8x1xf32>
    %69 = vector.broadcast %68 : vector<2x8x1xf32> to vector<2x8x8xf32>
    %70 = arith.subf %66, %69 : vector<2x8x8xf32>
    %71 = math.exp %70 : vector<2x8x8xf32>
    %cst_32 = arith.constant dense<0.000000e+00> : vector<2x8xf32>
    %72 = vector.multi_reduction <add>, %71, %cst_32 [2] : vector<2x8x8xf32> to vector<2x8xf32>
    %73 = vector.shape_cast %72 : vector<2x8xf32> to vector<2x8x1xf32>
    %74 = tpu.reciprocal %73 {approx = true} : vector<2x8x1xf32> -> vector<2x8x1xf32>
    %75 = vector.broadcast %74 : vector<2x8x1xf32> to vector<2x8x8xf32>
    %76 = arith.mulf %71, %75 : vector<2x8x8xf32>
    "tpu.trace_start"() <{level = 10 : i32, message = "bqk,bkd->bqd"}> : () -> ()
    %cst_33 = arith.constant dense<0.000000e+00> : vector<2x8x8xf32>
    %77 = tpu.matmul %76, %63, %cst_33 {dimension_numbers = #tpu.dot_dimension_numbers<[2], [1], [1], [2], [0, 0, 0, 1, 1, 2], [0], [0]>} : vector<2x8x8xf32>, vector<2x8x8xf32>, vector<2x8x8xf32> -> vector<2x8x8xf32>
    "tpu.trace_stop"() : () -> ()
    %78 = vector.extract_strided_slice %27 {offsets = [0, 16], sizes = [16, 8], strides = [1, 1]} : vector<16x32xf32> to vector<16x8xf32>
    %79 = vector.shape_cast %78 : vector<16x8xf32> to vector<2x8x8xf32>
    %80 = vector.extract_strided_slice %32 {offsets = [0, 16], sizes = [16, 8], strides = [1, 1]} : vector<16x32xf32> to vector<16x8xf32>
    %81 = vector.shape_cast %80 : vector<16x8xf32> to vector<2x8x8xf32>
    %82 = vector.extract_strided_slice %37 {offsets = [0, 16], sizes = [16, 8], strides = [1, 1]} : vector<16x32xf32> to vector<16x8xf32>
    %83 = vector.shape_cast %82 : vector<16x8xf32> to vector<2x8x8xf32>
    "tpu.trace_start"() <{level = 10 : i32, message = "bqd,bkd->bqk"}> : () -> ()
    %cst_34 = arith.constant dense<0.000000e+00> : vector<2x8x8xf32>
    %84 = tpu.matmul %79, %81, %cst_34 {dimension_numbers = #tpu.dot_dimension_numbers<[2], [2], [1], [1], [0, 0, 0, 1, 1, 1], [0], [0]>} : vector<2x8x8xf32>, vector<2x8x8xf32>, vector<2x8x8xf32> -> vector<2x8x8xf32>
    "tpu.trace_stop"() : () -> ()
    %cst_35 = arith.constant 0.353553385 : f32
    %85 = vector.broadcast %cst_35 : f32 to vector<2x8x8xf32>
    %86 = arith.mulf %84, %85 : vector<2x8x8xf32>
    %cst_36 = arith.constant dense<0xFF800000> : vector<2x8xf32>
    %87 = vector.multi_reduction <maximumf>, %86, %cst_36 [2] : vector<2x8x8xf32> to vector<2x8xf32>
    %88 = vector.shape_cast %87 : vector<2x8xf32> to vector<2x8x1xf32>
    %89 = vector.broadcast %88 : vector<2x8x1xf32> to vector<2x8x8xf32>
    %90 = arith.subf %86, %89 : vector<2x8x8xf32>
    %91 = math.exp %90 : vector<2x8x8xf32>
    %cst_37 = arith.constant dense<0.000000e+00> : vector<2x8xf32>
    %92 = vector.multi_reduction <add>, %91, %cst_37 [2] : vector<2x8x8xf32> to vector<2x8xf32>
    %93 = vector.shape_cast %92 : vector<2x8xf32> to vector<2x8x1xf32>
    %94 = tpu.reciprocal %93 {approx = true} : vector<2x8x1xf32> -> vector<2x8x1xf32>
    %95 = vector.broadcast %94 : vector<2x8x1xf32> to vector<2x8x8xf32>
    %96 = arith.mulf %91, %95 : vector<2x8x8xf32>
    "tpu.trace_start"() <{level = 10 : i32, message = "bqk,bkd->bqd"}> : () -> ()
    %cst_38 = arith.constant dense<0.000000e+00> : vector<2x8x8xf32>
    %97 = tpu.matmul %96, %83, %cst_38 {dimension_numbers = #tpu.dot_dimension_numbers<[2], [1], [1], [2], [0, 0, 0, 1, 1, 2], [0], [0]>} : vector<2x8x8xf32>, vector<2x8x8xf32>, vector<2x8x8xf32> -> vector<2x8x8xf32>
    "tpu.trace_stop"() : () -> ()
    %98 = vector.extract_strided_slice %27 {offsets = [0, 24], sizes = [16, 8], strides = [1, 1]} : vector<16x32xf32> to vector<16x8xf32>
    %99 = vector.shape_cast %98 : vector<16x8xf32> to vector<2x8x8xf32>
    %100 = vector.extract_strided_slice %32 {offsets = [0, 24], sizes = [16, 8], strides = [1, 1]} : vector<16x32xf32> to vector<16x8xf32>
    %101 = vector.shape_cast %100 : vector<16x8xf32> to vector<2x8x8xf32>
    %102 = vector.extract_strided_slice %37 {offsets = [0, 24], sizes = [16, 8], strides = [1, 1]} : vector<16x32xf32> to vector<16x8xf32>
    %103 = vector.shape_cast %102 : vector<16x8xf32> to vector<2x8x8xf32>
    "tpu.trace_start"() <{level = 10 : i32, message = "bqd,bkd->bqk"}> : () -> ()
    %cst_39 = arith.constant dense<0.000000e+00> : vector<2x8x8xf32>
    %104 = tpu.matmul %99, %101, %cst_39 {dimension_numbers = #tpu.dot_dimension_numbers<[2], [2], [1], [1], [0, 0, 0, 1, 1, 1], [0], [0]>} : vector<2x8x8xf32>, vector<2x8x8xf32>, vector<2x8x8xf32> -> vector<2x8x8xf32>
    "tpu.trace_stop"() : () -> ()
    %cst_40 = arith.constant 0.353553385 : f32
    %105 = vector.broadcast %cst_40 : f32 to vector<2x8x8xf32>
    %106 = arith.mulf %104, %105 : vector<2x8x8xf32>
    %cst_41 = arith.constant dense<0xFF800000> : vector<2x8xf32>
    %107 = vector.multi_reduction <maximumf>, %106, %cst_41 [2] : vector<2x8x8xf32> to vector<2x8xf32>
    %108 = vector.shape_cast %107 : vector<2x8xf32> to vector<2x8x1xf32>
    %109 = vector.broadcast %108 : vector<2x8x1xf32> to vector<2x8x8xf32>
    %110 = arith.subf %106, %109 : vector<2x8x8xf32>
    %111 = math.exp %110 : vector<2x8x8xf32>
    %cst_42 = arith.constant dense<0.000000e+00> : vector<2x8xf32>
    %112 = vector.multi_reduction <add>, %111, %cst_42 [2] : vector<2x8x8xf32> to vector<2x8xf32>
    %113 = vector.shape_cast %112 : vector<2x8xf32> to vector<2x8x1xf32>
    %114 = tpu.reciprocal %113 {approx = true} : vector<2x8x1xf32> -> vector<2x8x1xf32>
    %115 = vector.broadcast %114 : vector<2x8x1xf32> to vector<2x8x8xf32>
    %116 = arith.mulf %111, %115 : vector<2x8x8xf32>
    "tpu.trace_start"() <{level = 10 : i32, message = "bqk,bkd->bqd"}> : () -> ()
    %cst_43 = arith.constant dense<0.000000e+00> : vector<2x8x8xf32>
    %117 = tpu.matmul %116, %103, %cst_43 {dimension_numbers = #tpu.dot_dimension_numbers<[2], [1], [1], [2], [0, 0, 0, 1, 1, 2], [0], [0]>} : vector<2x8x8xf32>, vector<2x8x8xf32>, vector<2x8x8xf32> -> vector<2x8x8xf32>
    "tpu.trace_stop"() : () -> ()
    %118 = tpu.concatenate %57, %77, %97, %117 in 2 : vector<2x8x8xf32>, vector<2x8x8xf32>, vector<2x8x8xf32>, vector<2x8x8xf32> -> vector<2x8x32xf32>
    %119 = vector.shape_cast %118 : vector<2x8x32xf32> to vector<16x32xf32>
    %c0_44 = arith.constant 0 : index
    %c0_45 = arith.constant 0 : index
    %120 = vector.load %arg10[%c0_44, %c0_45] : memref<32x32xf32, #tpu.memory_space<vmem>>, vector<32x32xf32>
    %cst_46 = arith.constant dense<0.000000e+00> : vector<16x32xf32>
    %121 = tpu.matmul %119, %120, %cst_46 {dimension_numbers = #tpu.dot_dimension_numbers<[1], [0], [0], [1], [0, 0, 1, 1], [], []>} : vector<16x32xf32>, vector<32x32xf32>, vector<16x32xf32> -> vector<16x32xf32>
    %c0_47 = arith.constant 0 : index
    %c0_48 = arith.constant 0 : index
    %122 = vector.load %arg11[%c0_47, %c0_48] : memref<1x32xf32, #tpu.memory_space<vmem>>, vector<1x32xf32>
    %123 = vector.broadcast %122 : vector<1x32xf32> to vector<16x32xf32>
    %124 = arith.addf %121, %123 : vector<16x32xf32>
    %125 = arith.addf %0, %124 : vector<16x32xf32>
    %c0_49 = arith.constant 0 : index
    %c0_50 = arith.constant 0 : index
    %126 = vector.load %arg12[%c0_49, %c0_50] : memref<1x32xf32, #tpu.memory_space<vmem>>, vector<1x32xf32>
    %c0_51 = arith.constant 0 : index
    %c0_52 = arith.constant 0 : index
    %127 = vector.load %arg13[%c0_51, %c0_52] : memref<1x32xf32, #tpu.memory_space<vmem>>, vector<1x32xf32>
    %cst_53 = arith.constant dense<0.000000e+00> : vector<16xf32>
    %128 = vector.multi_reduction <add>, %125, %cst_53 [1] : vector<16x32xf32> to vector<16xf32>
    %129 = vector.shape_cast %128 : vector<16xf32> to vector<16x1xf32>
    %cst_54 = arith.constant 3.200000e+01 : f32
    %130 = vector.broadcast %cst_54 : f32 to vector<16x1xf32>
    %131 = arith.divf %129, %130 : vector<16x1xf32>
    %132 = vector.broadcast %131 : vector<16x1xf32> to vector<16x32xf32>
    %133 = arith.subf %125, %132 : vector<16x32xf32>
    %134 = arith.mulf %133, %133 : vector<16x32xf32>
    %cst_55 = arith.constant dense<0.000000e+00> : vector<16xf32>
    %135 = vector.multi_reduction <add>, %134, %cst_55 [1] : vector<16x32xf32> to vector<16xf32>
    %136 = vector.shape_cast %135 : vector<16xf32> to vector<16x1xf32>
    %cst_56 = arith.constant 3.200000e+01 : f32
    %137 = vector.broadcast %cst_56 : f32 to vector<16x1xf32>
    %138 = arith.divf %136, %137 : vector<16x1xf32>
    %cst_57 = arith.constant 9.99999974E-6 : f32
    %139 = vector.broadcast %cst_57 : f32 to vector<16x1xf32>
    %140 = arith.addf %138, %139 : vector<16x1xf32>
    %141 = math.rsqrt %140 : vector<16x1xf32>
    %142 = vector.broadcast %141 : vector<16x1xf32> to vector<16x32xf32>
    %143 = arith.mulf %133, %142 : vector<16x32xf32>
    %144 = vector.broadcast %126 : vector<1x32xf32> to vector<16x32xf32>
    %145 = arith.mulf %143, %144 : vector<16x32xf32>
    %146 = vector.broadcast %127 : vector<1x32xf32> to vector<16x32xf32>
    %147 = arith.addf %145, %146 : vector<16x32xf32>
    %c0_58 = arith.constant 0 : index
    %c0_59 = arith.constant 0 : index
    %148 = vector.load %arg14[%c0_58, %c0_59] : memref<32x128xf32, #tpu.memory_space<vmem>>, vector<32x128xf32>
    %cst_60 = arith.constant dense<0.000000e+00> : vector<16x128xf32>
    %149 = tpu.matmul %147, %148, %cst_60 {dimension_numbers = #tpu.dot_dimension_numbers<[1], [0], [0], [1], [0, 0, 1, 1], [], []>} : vector<16x32xf32>, vector<32x128xf32>, vector<16x128xf32> -> vector<16x128xf32>
    %c0_61 = arith.constant 0 : index
    %c0_62 = arith.constant 0 : index
    %150 = vector.load %arg15[%c0_61, %c0_62] : memref<1x128xf32, #tpu.memory_space<vmem>>, vector<1x128xf32>
    %151 = vector.broadcast %150 : vector<1x128xf32> to vector<16x128xf32>
    %152 = arith.addf %149, %151 : vector<16x128xf32>
    %cst_63 = arith.constant 5.000000e-01 : f32
    %153 = vector.broadcast %cst_63 : f32 to vector<16x128xf32>
    %154 = arith.mulf %153, %152 : vector<16x128xf32>
    %cst_64 = arith.constant 0.707106769 : f32
    %155 = vector.broadcast %cst_64 : f32 to vector<16x128xf32>
    %156 = arith.mulf %152, %155 : vector<16x128xf32>
    %157 = math.absf %156 : vector<16x128xf32>
    %cst_65 = arith.constant 0.327591091 : f32
    %158 = vector.broadcast %cst_65 : f32 to vector<16x128xf32>
    %159 = arith.mulf %158, %157 : vector<16x128xf32>
    %cst_66 = arith.constant 1.000000e+00 : f32
    %160 = vector.broadcast %cst_66 : f32 to vector<16x128xf32>
    %161 = arith.addf %160, %159 : vector<16x128xf32>
    %162 = tpu.reciprocal %161 {approx = true} : vector<16x128xf32> -> vector<16x128xf32>
    %cst_67 = arith.constant 1.06140542 : f32
    %163 = vector.broadcast %cst_67 : f32 to vector<16x128xf32>
    %164 = arith.mulf %163, %162 : vector<16x128xf32>
    %cst_68 = arith.constant -1.45315206 : f32
    %165 = vector.broadcast %cst_68 : f32 to vector<16x128xf32>
    %166 = arith.addf %164, %165 : vector<16x128xf32>
    %167 = arith.mulf %166, %162 : vector<16x128xf32>
    %cst_69 = arith.constant 1.42141378 : f32
    %168 = vector.broadcast %cst_69 : f32 to vector<16x128xf32>
    %169 = arith.addf %167, %168 : vector<16x128xf32>
    %170 = arith.mulf %169, %162 : vector<16x128xf32>
    %cst_70 = arith.constant -0.284496725 : f32
    %171 = vector.broadcast %cst_70 : f32 to vector<16x128xf32>
    %172 = arith.addf %170, %171 : vector<16x128xf32>
    %173 = arith.mulf %172, %162 : vector<16x128xf32>
    %cst_71 = arith.constant 0.254829586 : f32
    %174 = vector.broadcast %cst_71 : f32 to vector<16x128xf32>
    %175 = arith.addf %173, %174 : vector<16x128xf32>
    %176 = arith.mulf %175, %162 : vector<16x128xf32>
    %cst_72 = arith.constant 0.000000e+00 : f32
    %177 = vector.broadcast %cst_72 : f32 to vector<16x128xf32>
    %178 = arith.subf %177, %157 : vector<16x128xf32>
    %179 = arith.mulf %178, %157 : vector<16x128xf32>
    %180 = math.exp %179 : vector<16x128xf32>
    %181 = arith.mulf %176, %180 : vector<16x128xf32>
    %cst_73 = arith.constant 1.000000e+00 : f32
    %182 = vector.broadcast %cst_73 : f32 to vector<16x128xf32>
    %183 = arith.subf %182, %181 : vector<16x128xf32>
    %cst_74 = arith.constant 0.000000e+00 : f32
    %184 = vector.broadcast %cst_74 : f32 to vector<16x128xf32>
    %185 = arith.cmpf oge, %156, %184 : vector<16x128xf32>
    %cst_75 = arith.constant 0.000000e+00 : f32
    %186 = vector.broadcast %cst_75 : f32 to vector<16x128xf32>
    %187 = arith.subf %186, %183 : vector<16x128xf32>
    %188 = arith.select %185, %183, %187 : vector<16x128xi1>, vector<16x128xf32>
    %cst_76 = arith.constant 1.000000e+00 : f32
    %189 = vector.broadcast %cst_76 : f32 to vector<16x128xf32>
    %190 = arith.addf %189, %188 : vector<16x128xf32>
    %191 = arith.mulf %154, %190 : vector<16x128xf32>
    %c0_77 = arith.constant 0 : index
    %c0_78 = arith.constant 0 : index
    %192 = vector.load %arg16[%c0_77, %c0_78] : memref<128x32xf32, #tpu.memory_space<vmem>>, vector<128x32xf32>
    %cst_79 = arith.constant dense<0.000000e+00> : vector<16x32xf32>
    %193 = tpu.matmul %191, %192, %cst_79 {dimension_numbers = #tpu.dot_dimension_numbers<[1], [0], [0], [1], [0, 0, 1, 1], [], []>} : vector<16x128xf32>, vector<128x32xf32>, vector<16x32xf32> -> vector<16x32xf32>
    %c0_80 = arith.constant 0 : index
    %c0_81 = arith.constant 0 : index
    %194 = vector.load %arg17[%c0_80, %c0_81] : memref<1x32xf32, #tpu.memory_space<vmem>>, vector<1x32xf32>
    %195 = vector.broadcast %194 : vector<1x32xf32> to vector<16x32xf32>
    %196 = arith.addf %193, %195 : vector<16x32xf32>
    %197 = arith.addf %125, %196 : vector<16x32xf32>
    %c0_82 = arith.constant 0 : index
    %c0_83 = arith.constant 0 : index
    %198 = vector.load %arg18[%c0_82, %c0_83] : memref<16x32xf32, #tpu.memory_space<vmem>>, vector<16x32xf32>
    tpu.vector_store %arg18[%c0_82, %c0_83], %197 {strides = array<i32>} : memref<16x32xf32, #tpu.memory_space<vmem>>, vector<16x32xf32>,
    return
  }
  func.func @transform_0(%arg0: i32) -> (i32, i32) {
    %c0_i32 = arith.constant 0 : i32
    %c0_i32_0 = arith.constant 0 : i32
    return %arg0, %c0_i32 : i32, i32
  }
  func.func @transform_1(%arg0: i32) -> (i32, i32) {
    %c0_i32 = arith.constant 0 : i32
    %c0_i32_0 = arith.constant 0 : i32
    %c0_i32_1 = arith.constant 0 : i32
    return %c0_i32, %c0_i32_0 : i32, i32
  }
  func.func @transform_2(%arg0: i32) -> (i32, i32) {
    %c0_i32 = arith.constant 0 : i32
    %c0_i32_0 = arith.constant 0 : i32
    %c0_i32_1 = arith.constant 0 : i32
    return %c0_i32, %c0_i32_0 : i32, i32
  }
  func.func @transform_3(%arg0: i32) -> (i32, i32) {
    %c0_i32 = arith.constant 0 : i32
    %c0_i32_0 = arith.constant 0 : i32
    %c0_i32_1 = arith.constant 0 : i32
    return %c0_i32, %c0_i32_0 : i32, i32
  }
  func.func @transform_4(%arg0: i32) -> (i32, i32) {
    %c0_i32 = arith.constant 0 : i32
    %c0_i32_0 = arith.constant 0 : i32
    %c0_i32_1 = arith.constant 0 : i32
    return %c0_i32, %c0_i32_0 : i32, i32
  }
  func.func @transform_5(%arg0: i32) -> (i32, i32) {
    %c0_i32 = arith.constant 0 : i32
    %c0_i32_0 = arith.constant 0 : i32
    %c0_i32_1 = arith.constant 0 : i32
    return %c0_i32, %c0_i32_0 : i32, i32
  }
  func.func @transform_6(%arg0: i32) -> (i32, i32) {
    %c0_i32 = arith.constant 0 : i32
    %c0_i32_0 = arith.constant 0 : i32
    %c0_i32_1 = arith.constant 0 : i32
    return %c0_i32, %c0_i32_0 : i32, i32
  }
  func.func @transform_7(%arg0: i32) -> (i32, i32) {
    %c0_i32 = arith.constant 0 : i32
    %c0_i32_0 = arith.constant 0 : i32
    %c0_i32_1 = arith.constant 0 : i32
    return %c0_i32, %c0_i32_0 : i32, i32
  }
  func.func @transform_8(%arg0: i32) -> (i32, i32) {
    %c0_i32 = arith.constant 0 : i32
    %c0_i32_0 = arith.constant 0 : i32
    %c0_i32_1 = arith.constant 0 : i32
    return %c0_i32, %c0_i32_0 : i32, i32
  }
  func.func @transform_9(%arg0: i32) -> (i32, i32) {
    %c0_i32 = arith.constant 0 : i32
    %c0_i32_0 = arith.constant 0 : i32
    %c0_i32_1 = arith.constant 0 : i32
    return %c0_i32, %c0_i32_0 : i32, i32
  }
  func.func @transform_10(%arg0: i32) -> (i32, i32) {
    %c0_i32 = arith.constant 0 : i32
    %c0_i32_0 = arith.constant 0 : i32
    %c0_i32_1 = arith.constant 0 : i32
    return %c0_i32, %c0_i32_0 : i32, i32
  }
  func.func @transform_11(%arg0: i32) -> (i32, i32) {
    %c0_i32 = arith.constant 0 : i32
    %c0_i32_0 = arith.constant 0 : i32
    %c0_i32_1 = arith.constant 0 : i32
    return %c0_i32, %c0_i32_0 : i32, i32
  }
  func.func @transform_12(%arg0: i32) -> (i32, i32) {
    %c0_i32 = arith.constant 0 : i32
    %c0_i32_0 = arith.constant 0 : i32
    %c0_i32_1 = arith.constant 0 : i32
    return %c0_i32, %c0_i32_0 : i32, i32
  }
  func.func @transform_13(%arg0: i32) -> (i32, i32) {
    %c0_i32 = arith.constant 0 : i32
    %c0_i32_0 = arith.constant 0 : i32
    %c0_i32_1 = arith.constant 0 : i32
    return %c0_i32, %c0_i32_0 : i32, i32
  }
  func.func @transform_14(%arg0: i32) -> (i32, i32) {
    %c0_i32 = arith.constant 0 : i32
    %c0_i32_0 = arith.constant 0 : i32
    %c0_i32_1 = arith.constant 0 : i32
    return %c0_i32, %c0_i32_0 : i32, i32
  }
  func.func @transform_15(%arg0: i32) -> (i32, i32) {
    %c0_i32 = arith.constant 0 : i32
    %c0_i32_0 = arith.constant 0 : i32
    %c0_i32_1 = arith.constant 0 : i32
    return %c0_i32, %c0_i32_0 : i32, i32
  }
  func.func @transform_16(%arg0: i32) -> (i32, i32) {
    %c0_i32 = arith.constant 0 : i32
    %c0_i32_0 = arith.constant 0 : i32
    %c0_i32_1 = arith.constant 0 : i32
    return %c0_i32, %c0_i32_0 : i32, i32
  }
  func.func @transform_17(%arg0: i32) -> (i32, i32) {
    %c0_i32 = arith.constant 0 : i32
    %c0_i32_0 = arith.constant 0 : i32
    return %arg0, %c0_i32 : i32, i32
  }
}

</mosaic_0001>

<llo_original>
// kernel: tpu_custom_call.1
$region0: #{tpu_custom_call.1}
  #allocation0 [shape = 'u32[]', space=smem, size = 0x4, offset = 0x4, fixed_abs, tag = 'smem constant byte address 0x4 - core index']
  #allocation1 [shape = 'u32[72,128]{1,0:T(1,128)}', space=vmem, size = 0x9000, scoped, tag = 'internal scratch']
  %s0 = inlined_call_operand.hbm [shape: f32[16,32], index: 0, kind: input, shape index: {}]
  %s1 = inlined_call_operand.hbm [shape: f32[1,32], index: 1, kind: input, shape index: {}]
  %s2 = inlined_call_operand.vmem [shape: f32[1,32], index: 2, kind: input, shape index: {}]
  %s3 = inlined_call_operand.vmem [shape: f32[32,32], index: 3, kind: input, shape index: {}]
  %s4 = inlined_call_operand.vmem [shape: f32[1,32], index: 4, kind: input, shape index: {}]
  %s5 = inlined_call_operand.vmem [shape: f32[32,32], index: 5, kind: input, shape index: {}]
  %s6 = inlined_call_operand.vmem [shape: f32[1,32], index: 6, kind: input, shape index: {}]
  %s7 = inlined_call_operand.vmem [shape: f32[32,32], index: 7, kind: input, shape index: {}]
  %s8 = inlined_call_operand.vmem [shape: f32[1,32], index: 8, kind: input, shape index: {}]
  %s9 = inlined_call_operand.vmem [shape: f32[32,32], index: 9, kind: input, shape index: {}]
  %s10 = inlined_call_operand.vmem [shape: f32[1,32], index: 10, kind: input, shape index: {}]
  %s11 = inlined_call_operand.vmem [shape: f32[1,32], index: 11, kind: input, shape index: {}]
  %s12 = inlined_call_operand.vmem [shape: f32[1,32], index: 12, kind: input, shape index: {}]
  %s13 = inlined_call_operand.vmem [shape: f32[32,128], index: 13, kind: input, shape index: {}]
  %s14 = inlined_call_operand.vmem [shape: f32[1,128], index: 14, kind: input, shape index: {}]
  %s15 = inlined_call_operand.vmem [shape: f32[128,32], index: 15, kind: input, shape index: {}]
  %s16 = inlined_call_operand.vmem [shape: f32[1,32], index: 16, kind: input, shape index: {}]
  %s17 = inlined_call_operand.hbm [shape: f32[16,32], index: 17, kind: output, shape index: {}]
  %s18 = sld [smem:[#allocation0]]
  $region86: #{tpu_custom_call.1} parent=0
    _
  %s20 = ssub.s32 1, %s18
  %s21 = scalar_select 0, %s20, %s18
  $region1: #{tpu_custom_call.1} parent=0
    #allocation2 [shape = 'u8[8192]{0}', space=vmem, size = 0x2000, scoped, tag = 'input window, operand 0, single buffered']
    #allocation3 [shape = 's32[1]{0}', space=sflag, size = 0x4, scoped, tag = 'scoped memory for tpu_custom_call.1']
    #allocation4 [shape = 's32[1]{0}', space=sflag, size = 0x4, scoped, tag = 'scoped memory for tpu_custom_call.1']
    #allocation5 [shape = 'u8[512]{0}', space=vmem, size = 0x400, scoped, tag = 'input window, operand 1, single buffered']
    #allocation6 [shape = 's32[1]{0}', space=sflag, size = 0x4, scoped, tag = 'scoped memory for tpu_custom_call.1']
    #allocation7 [shape = 'u8[8192]{0}', space=vmem, size = 0x2000, scoped, tag = 'output window, operand 0, single buffered']
    %22 = vsyncpa [#allocation3], 0
    %23 = vsyncpa [#allocation6], 0
    %24 = vsyncpa [#allocation4], 0
    // Predicated region
    $region2: #{tpu_custom_call.1} parent=1 // pred_check
      _
    $region3: #{tpu_custom_call.1} parent=1 // pred_check_branch
      %26 = sbr.rel (0) target = $region5
    $region4: #{tpu_custom_call.1} parent=1 // pred_region
      %28 = vsyncadd [#allocation3], 0
      %s29 = sshll.u32 %s0, 4
      %s30 = int_to_ptr.hbm [resolvable:$true] %s29
      %s31 = sshll.u32 [#allocation2], 4
      %s32 = int_to_ptr.vmem [resolvable:$true] %s31
      %37 = dma.hbm_to_vmem [thread:$0]  %s30, 256, %s32, [#allocation3], 128, 128, 8
    $region5: #{tpu_custom_call.1} parent=1 // pred_fallthru
      _
    // Predicated region
    $region6: #{tpu_custom_call.1} parent=1 // pred_check
      _
    $region7: #{tpu_custom_call.1} parent=1 // pred_check_branch
      %39 = sbr.rel (0) target = $region9
    $region8: #{tpu_custom_call.1} parent=1 // pred_region
      %41 = vsyncadd [#allocation6], 0
      %s43 = sshll.u32 %s1, 4
      %s44 = int_to_ptr.hbm [resolvable:$true] %s43
      %s45 = sshll.u32 [#allocation5], 4
      %s46 = int_to_ptr.vmem [resolvable:$true] %s45
      %48 = dma.hbm_to_vmem [thread:$0]  %s44, 16, %s46, [#allocation6]
    $region9: #{tpu_custom_call.1} parent=1 // pred_fallthru
      _
    // Predicated region
    $region10: #{tpu_custom_call.1} parent=1 // pred_check
      _
    $region11: #{tpu_custom_call.1} parent=1 // pred_check_branch
      %50 = sbr.rel (0) target = $region13
    $region12: #{tpu_custom_call.1} parent=1 // pred_region
      _
    $region13: #{tpu_custom_call.1} parent=1 // pred_fallthru
      _
    // Predicated region
    $region14: #{tpu_custom_call.1} parent=1 // pred_check
      _
    $region15: #{tpu_custom_call.1} parent=1 // pred_check_branch
      %52 = sbr.rel (0) target = $region17
    $region16: #{tpu_custom_call.1} parent=1 // pred_region
      _
    $region17: #{tpu_custom_call.1} parent=1 // pred_fallthru
      _
    // Predicated region
    $region18: #{tpu_custom_call.1} parent=1 // pred_check
      _
    $region19: #{tpu_custom_call.1} parent=1 // pred_check_branch
      %54 = sbr.rel (0) target = $region21
    $region20: #{tpu_custom_call.1} parent=1 // pred_region
      _
    $region21: #{tpu_custom_call.1} parent=1 // pred_fallthru
      _
    // Predicated region
    $region22: #{tpu_custom_call.1} parent=1 // pred_check
      _
    $region23: #{tpu_custom_call.1} parent=1 // pred_check_branch
      %56 = sbr.rel (0) target = $region25
    $region24: #{tpu_custom_call.1} parent=1 // pred_region
      _
    $region25: #{tpu_custom_call.1} parent=1 // pred_fallthru
      _
    // Predicated region
    $region26: #{tpu_custom_call.1} parent=1 // pred_check
      _
    $region27: #{tpu_custom_call.1} parent=1 // pred_check_branch
      %58 = sbr.rel (0) target = $region29
    $region28: #{tpu_custom_call.1} parent=1 // pred_region
      _
    $region29: #{tpu_custom_call.1} parent=1 // pred_fallthru
      _
    // Predicated region
    $region30: #{tpu_custom_call.1} parent=1 // pred_check
      _
    $region31: #{tpu_custom_call.1} parent=1 // pred_check_branch
      %60 = sbr.rel (0) target = $region33
    $region32: #{tpu_custom_call.1} parent=1 // pred_region
      _
    $region33: #{tpu_custom_call.1} parent=1 // pred_fallthru
      _
    // Predicated region
    $region34: #{tpu_custom_call.1} parent=1 // pred_check
      _
    $region35: #{tpu_custom_call.1} parent=1 // pred_check_branch
      %62 = sbr.rel (0) target = $region37
    $region36: #{tpu_custom_call.1} parent=1 // pred_region
      _
    $region37: #{tpu_custom_call.1} parent=1 // pred_fallthru
      _
    // Predicated region
    $region38: #{tpu_custom_call.1} parent=1 // pred_check
      _
    $region39: #{tpu_custom_call.1} parent=1 // pred_check_branch
      %64 = sbr.rel (0) target = $region41
    $region40: #{tpu_custom_call.1} parent=1 // pred_region
      _
    $region41: #{tpu_custom_call.1} parent=1 // pred_fallthru
      _
    // Predicated region
    $region42: #{tpu_custom_call.1} parent=1 // pred_check
      _
    $region43: #{tpu_custom_call.1} parent=1 // pred_check_branch
      %66 = sbr.rel (0) target = $region45
    $region44: #{tpu_custom_call.1} parent=1 // pred_region
      _
    $region45: #{tpu_custom_call.1} parent=1 // pred_fallthru
      _
    // Predicated region
    $region46: #{tpu_custom_call.1} parent=1 // pred_check
      _
    $region47: #{tpu_custom_call.1} parent=1 // pred_check_branch
      %68 = sbr.rel (0) target = $region49
    $region48: #{tpu_custom_call.1} parent=1 // pred_region
      _
    $region49: #{tpu_custom_call.1} parent=1 // pred_fallthru
      _
    // Predicated region
    $region50: #{tpu_custom_call.1} parent=1 // pred_check
      _
    $region51: #{tpu_custom_call.1} parent=1 // pred_check_branch
      %70 = sbr.rel (0) target = $region53
    $region52: #{tpu_custom_call.1} parent=1 // pred_region
      _
    $region53: #{tpu_custom_call.1} parent=1 // pred_fallthru
      _
    // Predicated region
    $region54: #{tpu_custom_call.1} parent=1 // pred_check
      _
    $region55: #{tpu_custom_call.1} parent=1 // pred_check_branch
      %72 = sbr.rel (0) target = $region57
    $region56: #{tpu_custom_call.1} parent=1 // pred_region
      _
    $region57: #{tpu_custom_call.1} parent=1 // pred_fallthru
      _
    // Predicated region
    $region58: #{tpu_custom_call.1} parent=1 // pred_check
      _
    $region59: #{tpu_custom_call.1} parent=1 // pred_check_branch
      %74 = sbr.rel (0) target = $region61
    $region60: #{tpu_custom_call.1} parent=1 // pred_region
      _
    $region61: #{tpu_custom_call.1} parent=1 // pred_fallthru
      _
    // Predicated region
    $region62: #{tpu_custom_call.1} parent=1 // pred_check
      _
    $region63: #{tpu_custom_call.1} parent=1 // pred_check_branch
      %76 = sbr.rel (0) target = $region65
    $region64: #{tpu_custom_call.1} parent=1 // pred_region
      _
    $region65: #{tpu_custom_call.1} parent=1 // pred_fallthru
      _
    // Predicated region
    $region66: #{tpu_custom_call.1} parent=1 // pred_check
      _
    $region67: #{tpu_custom_call.1} parent=1 // pred_check_branch
      %78 = sbr.rel (0) target = $region69
    $region68: #{tpu_custom_call.1} parent=1 // pred_region
      _
    $region69: #{tpu_custom_call.1} parent=1 // pred_fallthru
      _
    // Predicated region
    $region70: #{tpu_custom_call.1} parent=1 // pred_check
      _
    $region71: #{tpu_custom_call.1} parent=1 // pred_check_branch
      %80 = sbr.rel (0) target = $region73
    $region72: #{tpu_custom_call.1} parent=1 // pred_region
      %82 = dma.done [#allocation3], 256
    $region73: #{tpu_custom_call.1} parent=1 // pred_fallthru
      _
    // Predicated region
    $region74: #{tpu_custom_call.1} parent=1 // pred_check
      _
    $region75: #{tpu_custom_call.1} parent=1 // pred_check_branch
      %84 = sbr.rel (0) target = $region77
    $region76: #{tpu_custom_call.1} parent=1 // pred_region
      %86 = dma.done [#allocation6], 16
    $region77: #{tpu_custom_call.1} parent=1 // pred_fallthru
      _
    %v87 = vld [vmem:[#allocation2] sm:$0xff]
    %v88 = vld [vmem:[#allocation2 + $0x8] sm:$0xff]
    %v89 = vld [vmem:[#allocation5] sm:$0x1]
    %v90 = vld [vmem:[%s2] sm:$0x1]
    %vm91 = vcmask 261120
    %v92 = vsel %vm91, %v87, 0.0
    %93 = vadd.xlane.f32.xlu0 %v92
    %v94 = vpop.xlane.xlu0 %93
    %v95 = vsel %vm91, %v88, 0.0
    %96 = vadd.xlane.f32.xlu0 %v95
    %v97 = vpop.xlane.xlu0 %96
    %v98 = vrcp.pop 32.0
    %v99 = vmul.f32 32.0, %v98
    %v100 = vsub.f32 1.0, %v99
    %v101 = vmul.f32 %v98, %v100
    %v102 = vadd.f32 %v98, %v101
    %vm103 = vweird.f32 %v98
    %v104 = vsel %vm103, %v98, %v102
    %v105 = vmul.f32 %v94, %v104
    %v106 = vmul.f32 %v97, %v104
    %v107 = vsub.f32 %v87, %v105
    %v108 = vsub.f32 %v88, %v106
    %v109 = vmul.f32 %v107, %v107
    %v110 = vmul.f32 %v108, %v108
    %v111 = vsel %vm91, %v109, 0.0
    %112 = vadd.xlane.f32.xlu0 %v111
    %v113 = vpop.xlane.xlu0 %112
    %v114 = vsel %vm91, %v110, 0.0
    %115 = vadd.xlane.f32.xlu0 %v114
    %v116 = vpop.xlane.xlu0 %115
    %v117 = vmul.f32 %v113, %v104
    %v118 = vmul.f32 %v116, %v104
    %v119 = vadd.f32 %v117, 1e-05
    %v120 = vadd.f32 %v118, 1e-05
    %v121 = vrsqrt.pop %v119
    %v122 = vmul.f32 %v121, %v119
    %v123 = vmul.f32 %v122, %v121
    %v124 = vmul.f32 0.5, %v123
    %v125 = vsub.f32 1.5, %v124
    %v126 = vmul.f32 %v121, %v125
    %vm127 = vweird.f32 %v119
    %vm128 = vweird.f32 %v121
    %vm129 = vmor %vm127, %vm128
    %v130 = vsel %vm129, %v121, %v126
    %v131 = vrsqrt.pop %v120
    %v132 = vmul.f32 %v131, %v120
    %v133 = vmul.f32 %v132, %v131
    %v134 = vmul.f32 0.5, %v133
    %v135 = vsub.f32 1.5, %v134
    %v136 = vmul.f32 %v131, %v135
    %vm137 = vweird.f32 %v120
    %vm138 = vweird.f32 %v131
    %vm139 = vmor %vm137, %vm138
    %v140 = vsel %vm139, %v131, %v136
    %v141 = vmul.f32 %v107, %v130
    %v142 = vmul.f32 %v108, %v140
    %v144 = vperm.slane %v89, 0
    %v146 = vmul.f32 %v141, %v144
    %v147 = vmul.f32 %v142, %v144
    %v149 = vperm.slane %v90, 0
    %v151 = vadd.f32 %v146, %v149
    %v152 = vadd.f32 %v147, %v149
    %v153 = vld [vmem:[%s3] sm:$0xff]
    %v154 = vld [vmem:[%s3 + $0x8] sm:$0xff]
    %v155 = vld [vmem:[%s3 + $0x10] sm:$0xff]
    %v156 = vld [vmem:[%s3 + $0x18] sm:$0xff]
    %v157 = vld [vmem:[%s4] sm:$0x1]
    %v159 = vperm.slane %v157, 0
    %v162 = vsel %vm91, %v151, 0
    %v165 = vsel %vm91, %v152, 0
    %167 = vmatpush.msra.mxu0 0.0
    %168 = vmatpush.msra.mxu0 0.0
    %169 = vmatpush.msra.mxu0 0.0
    %170 = vmatpush.msra.mxu0 0.0
    %171 = vmatpush.msra.mxu0 0.0
    %172 = vmatpush.msra.mxu0 0.0
    %173 = vmatpush.msra.mxu0 0.0
    %174 = vmatpush.msra.mxu0 0.0
    %175 = vmatpush.msra.mxu0 0.0
    %176 = vmatpush.msra.mxu0 0.0
    %177 = vmatpush.msra.mxu0 0.0
    %178 = vmatpush.msra.mxu0 0.0
    %179 = vmatpush.msra.mxu0 %v156
    %180 = vmatpush.msra.mxu0 %v155
    %181 = vmatpush.msra.mxu0 %v154
    %182 = vmatpush.msra.mxu0 %v153
    %183 = vmatmul.f32.gmra.mxu0 %v162
    %v184 = vpop.f32.mrf.mxu0
    %v185 = vadd.f32 %v159, %v184
    %186 = vmatmul.f32.gmra.mxu0 %v165
    %v187 = vpop.f32.mrf.mxu0
    %v188 = vadd.f32 %v159, %v187
    %189 = vdwg.mxu0
    %v190 = vld [vmem:[%s5] sm:$0xff]
    %v191 = vld [vmem:[%s5 + $0x8] sm:$0xff]
    %v192 = vld [vmem:[%s5 + $0x10] sm:$0xff]
    %v193 = vld [vmem:[%s5 + $0x18] sm:$0xff]
    %v194 = vld [vmem:[%s6] sm:$0x1]
    %v196 = vperm.slane %v194, 0
    %198 = vmatpush.msra.mxu0 0.0
    %199 = vmatpush.msra.mxu0 0.0
    %200 = vmatpush.msra.mxu0 0.0
    %201 = vmatpush.msra.mxu0 0.0
    %202 = vmatpush.msra.mxu0 0.0
    %203 = vmatpush.msra.mxu0 0.0
    %204 = vmatpush.msra.mxu0 0.0
    %205 = vmatpush.msra.mxu0 0.0
    %206 = vmatpush.msra.mxu0 0.0
    %207 = vmatpush.msra.mxu0 0.0
    %208 = vmatpush.msra.mxu0 0.0
    %209 = vmatpush.msra.mxu0 0.0
    %210 = vmatpush.msra.mxu0 %v193
    %211 = vmatpush.msra.mxu0 %v192
    %212 = vmatpush.msra.mxu0 %v191
    %213 = vmatpush.msra.mxu0 %v190
    %214 = vmatmul.f32.gmra.mxu0 %v162
    %v215 = vpop.f32.mrf.mxu0
    %v216 = vadd.f32 %v196, %v215
    %217 = vmatmul.f32.gmra.mxu0 %v165
    %v218 = vpop.f32.mrf.mxu0
    %v219 = vadd.f32 %v196, %v218
    %220 = vdwg.mxu0
    %v221 = vld [vmem:[%s7] sm:$0xff]
    %v222 = vld [vmem:[%s7 + $0x8] sm:$0xff]
    %v223 = vld [vmem:[%s7 + $0x10] sm:$0xff]
    %v224 = vld [vmem:[%s7 + $0x18] sm:$0xff]
    %v225 = vld [vmem:[%s8] sm:$0x1]
    %v227 = vperm.slane %v225, 0
    %229 = vmatpush.msra.mxu0 0.0
    %230 = vmatpush.msra.mxu0 0.0
    %231 = vmatpush.msra.mxu0 0.0
    %232 = vmatpush.msra.mxu0 0.0
    %233 = vmatpush.msra.mxu0 0.0
    %234 = vmatpush.msra.mxu0 0.0
    %235 = vmatpush.msra.mxu0 0.0
    %236 = vmatpush.msra.mxu0 0.0
    %237 = vmatpush.msra.mxu0 0.0
    %238 = vmatpush.msra.mxu0 0.0
    %239 = vmatpush.msra.mxu0 0.0
    %240 = vmatpush.msra.mxu0 0.0
    %241 = vmatpush.msra.mxu0 %v224
    %242 = vmatpush.msra.mxu0 %v223
    %243 = vmatpush.msra.mxu0 %v222
    %244 = vmatpush.msra.mxu0 %v221
    %245 = vmatmul.f32.gmra.mxu0 %v162
    %v246 = vpop.f32.mrf.mxu0
    %v247 = vadd.f32 %v227, %v246
    %248 = vmatmul.f32.gmra.mxu0 %v165
    %v249 = vpop.f32.mrf.mxu0
    %v250 = vadd.f32 %v227, %v249
    %251 = vdwg.mxu0
    %vm252 = vcmask 64512
    %v254 = vsel %vm252, %v185, 0
    %v257 = vsel %vm252, %v216, 0
    %259 = vmatpush.xpose.msra.mxu0 0.0
    %260 = vmatpush.xpose.msra.mxu0 0.0
    %261 = vmatpush.xpose.msra.mxu0 0.0
    %262 = vmatpush.xpose.msra.mxu0 0.0
    %263 = vmatpush.xpose.msra.mxu0 0.0
    %264 = vmatpush.xpose.msra.mxu0 0.0
    %265 = vmatpush.xpose.msra.mxu0 0.0
    %266 = vmatpush.xpose.msra.mxu0 0.0
    %267 = vmatpush.xpose.msra.mxu0 0.0
    %268 = vmatpush.xpose.msra.mxu0 0.0
    %269 = vmatpush.xpose.msra.mxu0 0.0
    %270 = vmatpush.xpose.msra.mxu0 0.0
    %271 = vmatpush.xpose.msra.mxu0 0.0
    %272 = vmatpush.xpose.msra.mxu0 0.0
    %273 = vmatpush.xpose.msra.mxu0 0.0
    %274 = vmatpush.xpose.msra.mxu0 %v257
    %275 = vmatmul.f32.gmra.mxu0 %v254
    %v276 = vpop.f32.mrf.mxu0
    %v277 = vadd.f32 0.0, %v276
    %278 = vdwg.mxu0
    %v280 = vsel %vm252, %v188, 0
    %v283 = vsel %vm252, %v219, 0
    %285 = vmatpush.xpose.msra.mxu0 0.0
    %286 = vmatpush.xpose.msra.mxu0 0.0
    %287 = vmatpush.xpose.msra.mxu0 0.0
    %288 = vmatpush.xpose.msra.mxu0 0.0
    %289 = vmatpush.xpose.msra.mxu0 0.0
    %290 = vmatpush.xpose.msra.mxu0 0.0
    %291 = vmatpush.xpose.msra.mxu0 0.0
    %292 = vmatpush.xpose.msra.mxu0 0.0
    %293 = vmatpush.xpose.msra.mxu0 0.0
    %294 = vmatpush.xpose.msra.mxu0 0.0
    %295 = vmatpush.xpose.msra.mxu0 0.0
    %296 = vmatpush.xpose.msra.mxu0 0.0
    %297 = vmatpush.xpose.msra.mxu0 0.0
    %298 = vmatpush.xpose.msra.mxu0 0.0
    %299 = vmatpush.xpose.msra.mxu0 0.0
    %300 = vmatpush.xpose.msra.mxu0 %v283
    %301 = vmatmul.f32.gmra.mxu0 %v280
    %v302 = vpop.f32.mrf.mxu0
    %v303 = vadd.f32 0.0, %v302
    %304 = vdwg.mxu0
    %v305 = vmul.f32 %v277, 0.35355338
    %v306 = vmul.f32 %v303, 0.35355338
    %v307 = vsel %vm252, %v305, -inf
    %308 = vmax.xlane.f32.xlu0 %v307
    %v309 = vpop.xlane.xlu0 %308
    %v310 = vsel %vm252, %v306, -inf
    %311 = vmax.xlane.f32.xlu0 %v310
    %v312 = vpop.xlane.xlu0 %311
    %v313 = vsub.f32 %v305, %v309
    %v314 = vsub.f32 %v306, %v312
    %v315 = vmul.f32 %v313, 1.442695
    %v316 = vpow.pop %v315
    %v317 = vmul.f32 %v314, 1.442695
    %v318 = vpow.pop %v317
    %v319 = vsel %vm252, %v316, 0.0
    %320 = vadd.xlane.f32.xlu0 %v319
    %v321 = vpop.xlane.xlu0 %320
    %v322 = vsel %vm252, %v318, 0.0
    %323 = vadd.xlane.f32.xlu0 %v322
    %v324 = vpop.xlane.xlu0 %323
    %v325 = vrcp.pop %v321
    %v326 = vrcp.pop %v324
    %v327 = vmul.f32 %v316, %v325
    %v328 = vmul.f32 %v318, %v326
    %v330 = vsel %vm252, %v327, 0
    %332 = vmatpush.msra.mxu0 0.0
    %333 = vmatpush.msra.mxu0 0.0
    %334 = vmatpush.msra.mxu0 0.0
    %335 = vmatpush.msra.mxu0 0.0
    %336 = vmatpush.msra.mxu0 0.0
    %337 = vmatpush.msra.mxu0 0.0
    %338 = vmatpush.msra.mxu0 0.0
    %339 = vmatpush.msra.mxu0 0.0
    %340 = vmatpush.msra.mxu0 0.0
    %341 = vmatpush.msra.mxu0 0.0
    %342 = vmatpush.msra.mxu0 0.0
    %343 = vmatpush.msra.mxu0 0.0
    %344 = vmatpush.msra.mxu0 0.0
    %345 = vmatpush.msra.mxu0 0.0
    %346 = vmatpush.msra.mxu0 0.0
    %347 = vmatpush.msra.mxu0 %v247
    %348 = vmatmul.f32.gmra.mxu0 %v330
    %v349 = vpop.f32.mrf.mxu0
    %v350 = vadd.f32 0.0, %v349
    %351 = vdwg.mxu0
    %v353 = vsel %vm252, %v328, 0
    %355 = vmatpush.msra.mxu0 0.0
    %356 = vmatpush.msra.mxu0 0.0
    %357 = vmatpush.msra.mxu0 0.0
    %358 = vmatpush.msra.mxu0 0.0
    %359 = vmatpush.msra.mxu0 0.0
    %360 = vmatpush.msra.mxu0 0.0
    %361 = vmatpush.msra.mxu0 0.0
    %362 = vmatpush.msra.mxu0 0.0
    %363 = vmatpush.msra.mxu0 0.0
    %364 = vmatpush.msra.mxu0 0.0
    %365 = vmatpush.msra.mxu0 0.0
    %366 = vmatpush.msra.mxu0 0.0
    %367 = vmatpush.msra.mxu0 0.0
    %368 = vmatpush.msra.mxu0 0.0
    %369 = vmatpush.msra.mxu0 0.0
    %370 = vmatpush.msra.mxu0 %v250
    %371 = vmatmul.f32.gmra.mxu0 %v353
    %v372 = vpop.f32.mrf.mxu0
    %v373 = vadd.f32 0.0, %v372
    %374 = vdwg.mxu0
    %375 = vrot.lane.b32.xlu0 %v185, 120
    %v376 = vpop.permute.xlu0 %375
    %377 = vrot.lane.b32.xlu0 %v216, 120
    %v378 = vpop.permute.xlu0 %377
    %v379 = vsel %vm252, %v376, 0
    %v381 = vsel %vm252, %v378, 0
    %383 = vmatpush.xpose.msra.mxu0 0.0
    %384 = vmatpush.xpose.msra.mxu0 0.0
    %385 = vmatpush.xpose.msra.mxu0 0.0
    %386 = vmatpush.xpose.msra.mxu0 0.0
    %387 = vmatpush.xpose.msra.mxu0 0.0
    %388 = vmatpush.xpose.msra.mxu0 0.0
    %389 = vmatpush.xpose.msra.mxu0 0.0
    %390 = vmatpush.xpose.msra.mxu0 0.0
    %391 = vmatpush.xpose.msra.mxu0 0.0
    %392 = vmatpush.xpose.msra.mxu0 0.0
    %393 = vmatpush.xpose.msra.mxu0 0.0
    %394 = vmatpush.xpose.msra.mxu0 0.0
    %395 = vmatpush.xpose.msra.mxu0 0.0
    %396 = vmatpush.xpose.msra.mxu0 0.0
    %397 = vmatpush.xpose.msra.mxu0 0.0
    %398 = vmatpush.xpose.msra.mxu0 %v381
    %399 = vmatmul.f32.gmra.mxu0 %v379
    %v400 = vpop.f32.mrf.mxu0
    %v401 = vadd.f32 0.0, %v400
    %402 = vdwg.mxu0
    %403 = vrot.lane.b32.xlu0 %v188, 120
    %v404 = vpop.permute.xlu0 %403
    %405 = vrot.lane.b32.xlu0 %v219, 120
    %v406 = vpop.permute.xlu0 %405
    %v407 = vsel %vm252, %v404, 0
    %v409 = vsel %vm252, %v406, 0
    %411 = vmatpush.xpose.msra.mxu0 0.0
    %412 = vmatpush.xpose.msra.mxu0 0.0
    %413 = vmatpush.xpose.msra.mxu0 0.0
    %414 = vmatpush.xpose.msra.mxu0 0.0
    %415 = vmatpush.xpose.msra.mxu0 0.0
    %416 = vmatpush.xpose.msra.mxu0 0.0
    %417 = vmatpush.xpose.msra.mxu0 0.0
    %418 = vmatpush.xpose.msra.mxu0 0.0
    %419 = vmatpush.xpose.msra.mxu0 0.0
    %420 = vmatpush.xpose.msra.mxu0 0.0
    %421 = vmatpush.xpose.msra.mxu0 0.0
    %422 = vmatpush.xpose.msra.mxu0 0.0
    %423 = vmatpush.xpose.msra.mxu0 0.0
    %424 = vmatpush.xpose.msra.mxu0 0.0
    %425 = vmatpush.xpose.msra.mxu0 0.0
    %426 = vmatpush.xpose.msra.mxu0 %v409
    %427 = vmatmul.f32.gmra.mxu0 %v407
    %v428 = vpop.f32.mrf.mxu0
    %v429 = vadd.f32 0.0, %v428
    %430 = vdwg.mxu0
    %v431 = vmul.f32 %v401, 0.35355338
    %v432 = vmul.f32 %v429, 0.35355338
    %v433 = vsel %vm252, %v431, -inf
    %434 = vmax.xlane.f32.xlu0 %v433
    %v435 = vpop.xlane.xlu0 %434
    %v436 = vsel %vm252, %v432, -inf
    %437 = vmax.xlane.f32.xlu0 %v436
    %v438 = vpop.xlane.xlu0 %437
    %v439 = vsub.f32 %v431, %v435
    %v440 = vsub.f32 %v432, %v438
    %v441 = vmul.f32 %v439, 1.442695
    %v442 = vpow.pop %v441
    %v443 = vmul.f32 %v440, 1.442695
    %v444 = vpow.pop %v443
    %v445 = vsel %vm252, %v442, 0.0
    %446 = vadd.xlane.f32.xlu0 %v445
    %v447 = vpop.xlane.xlu0 %446
    %v448 = vsel %vm252, %v444, 0.0
    %449 = vadd.xlane.f32.xlu0 %v448
    %v450 = vpop.xlane.xlu0 %449
    %v451 = vrcp.pop %v447
    %v452 = vrcp.pop %v450
    %v453 = vmul.f32 %v442, %v451
    %v454 = vmul.f32 %v444, %v452
    %456 = vrot.lane.b32.xlu0 %v247, 120
    %v457 = vpop.permute.xlu0 %456
    %v460 = vsel %vm252, %v453, 0
    %462 = vmatpush.msra.mxu0 0.0
    %463 = vmatpush.msra.mxu0 0.0
    %464 = vmatpush.msra.mxu0 0.0
    %465 = vmatpush.msra.mxu0 0.0
    %466 = vmatpush.msra.mxu0 0.0
    %467 = vmatpush.msra.mxu0 0.0
    %468 = vmatpush.msra.mxu0 0.0
    %469 = vmatpush.msra.mxu0 0.0
    %470 = vmatpush.msra.mxu0 0.0
    %471 = vmatpush.msra.mxu0 0.0
    %472 = vmatpush.msra.mxu0 0.0
    %473 = vmatpush.msra.mxu0 0.0
    %474 = vmatpush.msra.mxu0 0.0
    %475 = vmatpush.msra.mxu0 0.0
    %476 = vmatpush.msra.mxu0 0.0
    %477 = vmatpush.msra.mxu0 %v457
    %478 = vmatmul.f32.gmra.mxu0 %v460
    %v479 = vpop.f32.mrf.mxu0
    %v480 = vadd.f32 0.0, %v479
    %481 = vdwg.mxu0
    %483 = vrot.lane.b32.xlu0 %v250, 120
    %v484 = vpop.permute.xlu0 %483
    %v487 = vsel %vm252, %v454, 0
    %489 = vmatpush.msra.mxu0 0.0
    %490 = vmatpush.msra.mxu0 0.0
    %491 = vmatpush.msra.mxu0 0.0
    %492 = vmatpush.msra.mxu0 0.0
    %493 = vmatpush.msra.mxu0 0.0
    %494 = vmatpush.msra.mxu0 0.0
    %495 = vmatpush.msra.mxu0 0.0
    %496 = vmatpush.msra.mxu0 0.0
    %497 = vmatpush.msra.mxu0 0.0
    %498 = vmatpush.msra.mxu0 0.0
    %499 = vmatpush.msra.mxu0 0.0
    %500 = vmatpush.msra.mxu0 0.0
    %501 = vmatpush.msra.mxu0 0.0
    %502 = vmatpush.msra.mxu0 0.0
    %503 = vmatpush.msra.mxu0 0.0
    %504 = vmatpush.msra.mxu0 %v484
    %505 = vmatmul.f32.gmra.mxu0 %v487
    %v506 = vpop.f32.mrf.mxu0
    %v507 = vadd.f32 0.0, %v506
    %508 = vdwg.mxu0
    %509 = vrot.lane.b32.xlu0 %v185, 112
    %v510 = vpop.permute.xlu0 %509
    %511 = vrot.lane.b32.xlu0 %v216, 112
    %v512 = vpop.permute.xlu0 %511
    %v513 = vsel %vm252, %v510, 0
    %v515 = vsel %vm252, %v512, 0
    %517 = vmatpush.xpose.msra.mxu0 0.0
    %518 = vmatpush.xpose.msra.mxu0 0.0
    %519 = vmatpush.xpose.msra.mxu0 0.0
    %520 = vmatpush.xpose.msra.mxu0 0.0
    %521 = vmatpush.xpose.msra.mxu0 0.0
    %522 = vmatpush.xpose.msra.mxu0 0.0
    %523 = vmatpush.xpose.msra.mxu0 0.0
    %524 = vmatpush.xpose.msra.mxu0 0.0
    %525 = vmatpush.xpose.msra.mxu0 0.0
    %526 = vmatpush.xpose.msra.mxu0 0.0
    %527 = vmatpush.xpose.msra.mxu0 0.0
    %528 = vmatpush.xpose.msra.mxu0 0.0
    %529 = vmatpush.xpose.msra.mxu0 0.0
    %530 = vmatpush.xpose.msra.mxu0 0.0
    %531 = vmatpush.xpose.msra.mxu0 0.0
    %532 = vmatpush.xpose.msra.mxu0 %v515
    %533 = vmatmul.f32.gmra.mxu0 %v513
    %v534 = vpop.f32.mrf.mxu0
    %v535 = vadd.f32 0.0, %v534
    %536 = vdwg.mxu0
    %537 = vrot.lane.b32.xlu0 %v188, 112
    %v538 = vpop.permute.xlu0 %537
    %539 = vrot.lane.b32.xlu0 %v219, 112
    %v540 = vpop.permute.xlu0 %539
    %v541 = vsel %vm252, %v538, 0
    %v543 = vsel %vm252, %v540, 0
    %545 = vmatpush.xpose.msra.mxu0 0.0
    %546 = vmatpush.xpose.msra.mxu0 0.0
    %547 = vmatpush.xpose.msra.mxu0 0.0
    %548 = vmatpush.xpose.msra.mxu0 0.0
    %549 = vmatpush.xpose.msra.mxu0 0.0
    %550 = vmatpush.xpose.msra.mxu0 0.0
    %551 = vmatpush.xpose.msra.mxu0 0.0
    %552 = vmatpush.xpose.msra.mxu0 0.0
    %553 = vmatpush.xpose.msra.mxu0 0.0
    %554 = vmatpush.xpose.msra.mxu0 0.0
    %555 = vmatpush.xpose.msra.mxu0 0.0
    %556 = vmatpush.xpose.msra.mxu0 0.0
    %557 = vmatpush.xpose.msra.mxu0 0.0
    %558 = vmatpush.xpose.msra.mxu0 0.0
    %559 = vmatpush.xpose.msra.mxu0 0.0
    %560 = vmatpush.xpose.msra.mxu0 %v543
    %561 = vmatmul.f32.gmra.mxu0 %v541
    %v562 = vpop.f32.mrf.mxu0
    %v563 = vadd.f32 0.0, %v562
    %564 = vdwg.mxu0
    %v565 = vmul.f32 %v535, 0.35355338
    %v566 = vmul.f32 %v563, 0.35355338
    %v567 = vsel %vm252, %v565, -inf
    %568 = vmax.xlane.f32.xlu0 %v567
    %v569 = vpop.xlane.xlu0 %568
    %v570 = vsel %vm252, %v566, -inf
    %571 = vmax.xlane.f32.xlu0 %v570
    %v572 = vpop.xlane.xlu0 %571
    %v573 = vsub.f32 %v565, %v569
    %v574 = vsub.f32 %v566, %v572
    %v575 = vmul.f32 %v573, 1.442695
    %v576 = vpow.pop %v575
    %v577 = vmul.f32 %v574, 1.442695
    %v578 = vpow.pop %v577
    %v579 = vsel %vm252, %v576, 0.0
    %580 = vadd.xlane.f32.xlu0 %v579
    %v581 = vpop.xlane.xlu0 %580
    %v582 = vsel %vm252, %v578, 0.0
    %583 = vadd.xlane.f32.xlu0 %v582
    %v584 = vpop.xlane.xlu0 %583
    %v585 = vrcp.pop %v581
    %v586 = vrcp.pop %v584
    %v587 = vmul.f32 %v576, %v585
    %v588 = vmul.f32 %v578, %v586
    %589 = vrot.lane.b32.xlu0 %v247, 112
    %v590 = vpop.permute.xlu0 %589
    %v593 = vsel %vm252, %v587, 0
    %595 = vmatpush.msra.mxu0 0.0
    %596 = vmatpush.msra.mxu0 0.0
    %597 = vmatpush.msra.mxu0 0.0
    %598 = vmatpush.msra.mxu0 0.0
    %599 = vmatpush.msra.mxu0 0.0
    %600 = vmatpush.msra.mxu0 0.0
    %601 = vmatpush.msra.mxu0 0.0
    %602 = vmatpush.msra.mxu0 0.0
    %603 = vmatpush.msra.mxu0 0.0
    %604 = vmatpush.msra.mxu0 0.0
    %605 = vmatpush.msra.mxu0 0.0
    %606 = vmatpush.msra.mxu0 0.0
    %607 = vmatpush.msra.mxu0 0.0
    %608 = vmatpush.msra.mxu0 0.0
    %609 = vmatpush.msra.mxu0 0.0
    %610 = vmatpush.msra.mxu0 %v590
    %611 = vmatmul.f32.gmra.mxu0 %v593
    %v612 = vpop.f32.mrf.mxu0
    %v613 = vadd.f32 0.0, %v612
    %614 = vdwg.mxu0
    %615 = vrot.lane.b32.xlu0 %v250, 112
    %v616 = vpop.permute.xlu0 %615
    %v619 = vsel %vm252, %v588, 0
    %621 = vmatpush.msra.mxu0 0.0
    %622 = vmatpush.msra.mxu0 0.0
    %623 = vmatpush.msra.mxu0 0.0
    %624 = vmatpush.msra.mxu0 0.0
    %625 = vmatpush.msra.mxu0 0.0
    %626 = vmatpush.msra.mxu0 0.0
    %627 = vmatpush.msra.mxu0 0.0
    %628 = vmatpush.msra.mxu0 0.0
    %629 = vmatpush.msra.mxu0 0.0
    %630 = vmatpush.msra.mxu0 0.0
    %631 = vmatpush.msra.mxu0 0.0
    %632 = vmatpush.msra.mxu0 0.0
    %633 = vmatpush.msra.mxu0 0.0
    %634 = vmatpush.msra.mxu0 0.0
    %635 = vmatpush.msra.mxu0 0.0
    %636 = vmatpush.msra.mxu0 %v616
    %637 = vmatmul.f32.gmra.mxu0 %v619
    %v638 = vpop.f32.mrf.mxu0
    %v639 = vadd.f32 0.0, %v638
    %640 = vdwg.mxu0
    %641 = vrot.lane.b32.xlu0 %v185, 104
    %v642 = vpop.permute.xlu0 %641
    %643 = vrot.lane.b32.xlu0 %v216, 104
    %v644 = vpop.permute.xlu0 %643
    %v645 = vsel %vm252, %v642, 0
    %v647 = vsel %vm252, %v644, 0
    %649 = vmatpush.xpose.msra.mxu0 0.0
    %650 = vmatpush.xpose.msra.mxu0 0.0
    %651 = vmatpush.xpose.msra.mxu0 0.0
    %652 = vmatpush.xpose.msra.mxu0 0.0
    %653 = vmatpush.xpose.msra.mxu0 0.0
    %654 = vmatpush.xpose.msra.mxu0 0.0
    %655 = vmatpush.xpose.msra.mxu0 0.0
    %656 = vmatpush.xpose.msra.mxu0 0.0
    %657 = vmatpush.xpose.msra.mxu0 0.0
    %658 = vmatpush.xpose.msra.mxu0 0.0
    %659 = vmatpush.xpose.msra.mxu0 0.0
    %660 = vmatpush.xpose.msra.mxu0 0.0
    %661 = vmatpush.xpose.msra.mxu0 0.0
    %662 = vmatpush.xpose.msra.mxu0 0.0
    %663 = vmatpush.xpose.msra.mxu0 0.0
    %664 = vmatpush.xpose.msra.mxu0 %v647
    %665 = vmatmul.f32.gmra.mxu0 %v645
    %v666 = vpop.f32.mrf.mxu0
    %v667 = vadd.f32 0.0, %v666
    %668 = vdwg.mxu0
    %669 = vrot.lane.b32.xlu0 %v188, 104
    %v670 = vpop.permute.xlu0 %669
    %671 = vrot.lane.b32.xlu0 %v219, 104
    %v672 = vpop.permute.xlu0 %671
    %v673 = vsel %vm252, %v670, 0
    %v675 = vsel %vm252, %v672, 0
    %677 = vmatpush.xpose.msra.mxu0 0.0
    %678 = vmatpush.xpose.msra.mxu0 0.0
    %679 = vmatpush.xpose.msra.mxu0 0.0
    %680 = vmatpush.xpose.msra.mxu0 0.0
    %681 = vmatpush.xpose.msra.mxu0 0.0
    %682 = vmatpush.xpose.msra.mxu0 0.0
    %683 = vmatpush.xpose.msra.mxu0 0.0
    %684 = vmatpush.xpose.msra.mxu0 0.0
    %685 = vmatpush.xpose.msra.mxu0 0.0
    %686 = vmatpush.xpose.msra.mxu0 0.0
    %687 = vmatpush.xpose.msra.mxu0 0.0
    %688 = vmatpush.xpose.msra.mxu0 0.0
    %689 = vmatpush.xpose.msra.mxu0 0.0
    %690 = vmatpush.xpose.msra.mxu0 0.0
    %691 = vmatpush.xpose.msra.mxu0 0.0
    %692 = vmatpush.xpose.msra.mxu0 %v675
    %693 = vmatmul.f32.gmra.mxu0 %v673
    %v694 = vpop.f32.mrf.mxu0
    %v695 = vadd.f32 0.0, %v694
    %696 = vdwg.mxu0
    %v697 = vmul.f32 %v667, 0.35355338
    %v698 = vmul.f32 %v695, 0.35355338
    %v699 = vsel %vm252, %v697, -inf
    %700 = vmax.xlane.f32.xlu0 %v699
    %v701 = vpop.xlane.xlu0 %700
    %v702 = vsel %vm252, %v698, -inf
    %703 = vmax.xlane.f32.xlu0 %v702
    %v704 = vpop.xlane.xlu0 %703
    %v705 = vsub.f32 %v697, %v701
    %v706 = vsub.f32 %v698, %v704
    %v707 = vmul.f32 %v705, 1.442695
    %v708 = vpow.pop %v707
    %v709 = vmul.f32 %v706, 1.442695
    %v710 = vpow.pop %v709
    %v711 = vsel %vm252, %v708, 0.0
    %712 = vadd.xlane.f32.xlu0 %v711
    %v713 = vpop.xlane.xlu0 %712
    %v714 = vsel %vm252, %v710, 0.0
    %715 = vadd.xlane.f32.xlu0 %v714
    %v716 = vpop.xlane.xlu0 %715
    %v717 = vrcp.pop %v713
    %v718 = vrcp.pop %v716
    %v719 = vmul.f32 %v708, %v717
    %v720 = vmul.f32 %v710, %v718
    %721 = vrot.lane.b32.xlu0 %v247, 104
    %v722 = vpop.permute.xlu0 %721
    %v725 = vsel %vm252, %v719, 0
    %727 = vmatpush.msra.mxu0 0.0
    %728 = vmatpush.msra.mxu0 0.0
    %729 = vmatpush.msra.mxu0 0.0
    %730 = vmatpush.msra.mxu0 0.0
    %731 = vmatpush.msra.mxu0 0.0
    %732 = vmatpush.msra.mxu0 0.0
    %733 = vmatpush.msra.mxu0 0.0
    %734 = vmatpush.msra.mxu0 0.0
    %735 = vmatpush.msra.mxu0 0.0
    %736 = vmatpush.msra.mxu0 0.0
    %737 = vmatpush.msra.mxu0 0.0
    %738 = vmatpush.msra.mxu0 0.0
    %739 = vmatpush.msra.mxu0 0.0
    %740 = vmatpush.msra.mxu0 0.0
    %741 = vmatpush.msra.mxu0 0.0
    %742 = vmatpush.msra.mxu0 %v722
    %743 = vmatmul.f32.gmra.mxu0 %v725
    %v744 = vpop.f32.mrf.mxu0
    %v745 = vadd.f32 0.0, %v744
    %746 = vdwg.mxu0
    %747 = vrot.lane.b32.xlu0 %v250, 104
    %v748 = vpop.permute.xlu0 %747
    %v751 = vsel %vm252, %v720, 0
    %753 = vmatpush.msra.mxu0 0.0
    %754 = vmatpush.msra.mxu0 0.0
    %755 = vmatpush.msra.mxu0 0.0
    %756 = vmatpush.msra.mxu0 0.0
    %757 = vmatpush.msra.mxu0 0.0
    %758 = vmatpush.msra.mxu0 0.0
    %759 = vmatpush.msra.mxu0 0.0
    %760 = vmatpush.msra.mxu0 0.0
    %761 = vmatpush.msra.mxu0 0.0
    %762 = vmatpush.msra.mxu0 0.0
    %763 = vmatpush.msra.mxu0 0.0
    %764 = vmatpush.msra.mxu0 0.0
    %765 = vmatpush.msra.mxu0 0.0
    %766 = vmatpush.msra.mxu0 0.0
    %767 = vmatpush.msra.mxu0 0.0
    %768 = vmatpush.msra.mxu0 %v748
    %769 = vmatmul.f32.gmra.mxu0 %v751
    %v770 = vpop.f32.mrf.mxu0
    %v771 = vadd.f32 0.0, %v770
    %772 = vdwg.mxu0
    %775 = vrot.lane.b32.xlu0 %v480, 8
    %v776 = vpop.permute.xlu0 %775
    %777 = vrot.lane.b32.xlu0 %v507, 8
    %v778 = vpop.permute.xlu0 %777
    %783 = vrot.lane.b32.xlu0 %v613, 16
    %v784 = vpop.permute.xlu0 %783
    %785 = vrot.lane.b32.xlu0 %v639, 16
    %v786 = vpop.permute.xlu0 %785
    %791 = vrot.lane.b32.xlu0 %v745, 24
    %v792 = vpop.permute.xlu0 %791
    %793 = vrot.lane.b32.xlu0 %v771, 24
    %v794 = vpop.permute.xlu0 %793
    %v797 = vsel %vm252, %v350, %v776
    %v798 = vsel %vm252, %v373, %v778
    %vm799 = vcmask 130048
    %v800 = vsel %vm799, %v797, %v784
    %v801 = vsel %vm799, %v798, %v786
    %vm802 = vcmask 195584
    %v803 = vsel %vm802, %v800, %v792
    %v804 = vsel %vm802, %v801, %v794
    %v805 = vld [vmem:[%s9] sm:$0xff]
    %v806 = vld [vmem:[%s9 + $0x8] sm:$0xff]
    %v807 = vld [vmem:[%s9 + $0x10] sm:$0xff]
    %v808 = vld [vmem:[%s9 + $0x18] sm:$0xff]
    %v809 = vld [vmem:[%s10] sm:$0x1]
    %v811 = vperm.slane %v809, 0
    %v814 = vsel %vm91, %v803, 0
    %v817 = vsel %vm91, %v804, 0
    %819 = vmatpush.msra.mxu0 0.0
    %820 = vmatpush.msra.mxu0 0.0
    %821 = vmatpush.msra.mxu0 0.0
    %822 = vmatpush.msra.mxu0 0.0
    %823 = vmatpush.msra.mxu0 0.0
    %824 = vmatpush.msra.mxu0 0.0
    %825 = vmatpush.msra.mxu0 0.0
    %826 = vmatpush.msra.mxu0 0.0
    %827 = vmatpush.msra.mxu0 0.0
    %828 = vmatpush.msra.mxu0 0.0
    %829 = vmatpush.msra.mxu0 0.0
    %830 = vmatpush.msra.mxu0 0.0
    %831 = vmatpush.msra.mxu0 %v808
    %832 = vmatpush.msra.mxu0 %v807
    %833 = vmatpush.msra.mxu0 %v806
    %834 = vmatpush.msra.mxu0 %v805
    %835 = vmatmul.f32.gmra.mxu0 %v814
    %v836 = vpop.f32.mrf.mxu0
    %v837 = vadd.f32 %v811, %v836
    %838 = vmatmul.f32.gmra.mxu0 %v817
    %v839 = vpop.f32.mrf.mxu0
    %v840 = vadd.f32 %v811, %v839
    %841 = vdwg.mxu0
    %v842 = vadd.f32 %v87, %v837
    %v843 = vadd.f32 %v88, %v840
    %v844 = vld [vmem:[%s11] sm:$0x1]
    %v845 = vld [vmem:[%s12] sm:$0x1]
    %v846 = vsel %vm91, %v842, 0.0
    %847 = vadd.xlane.f32.xlu0 %v846
    %v848 = vpop.xlane.xlu0 %847
    %v849 = vsel %vm91, %v843, 0.0
    %850 = vadd.xlane.f32.xlu0 %v849
    %v851 = vpop.xlane.xlu0 %850
    %v852 = vmul.f32 %v848, %v104
    %v853 = vmul.f32 %v851, %v104
    %v854 = vsub.f32 %v842, %v852
    %v855 = vsub.f32 %v843, %v853
    %v856 = vmul.f32 %v854, %v854
    %v857 = vmul.f32 %v855, %v855
    %v858 = vsel %vm91, %v856, 0.0
    %859 = vadd.xlane.f32.xlu0 %v858
    %v860 = vpop.xlane.xlu0 %859
    %v861 = vsel %vm91, %v857, 0.0
    %862 = vadd.xlane.f32.xlu0 %v861
    %v863 = vpop.xlane.xlu0 %862
    %v864 = vmul.f32 %v860, %v104
    %v865 = vmul.f32 %v863, %v104
    %v866 = vadd.f32 %v864, 1e-05
    %v867 = vadd.f32 %v865, 1e-05
    %v868 = vrsqrt.pop %v866
    %v869 = vmul.f32 %v868, %v866
    %v870 = vmul.f32 %v869, %v868
    %v871 = vmul.f32 0.5, %v870
    %v872 = vsub.f32 1.5, %v871
    %v873 = vmul.f32 %v868, %v872
    %vm874 = vweird.f32 %v866
    %vm875 = vweird.f32 %v868
    %vm876 = vmor %vm874, %vm875
    %v877 = vsel %vm876, %v868, %v873
    %v878 = vrsqrt.pop %v867
    %v879 = vmul.f32 %v878, %v867
    %v880 = vmul.f32 %v879, %v878
    %v881 = vmul.f32 0.5, %v880
    %v882 = vsub.f32 1.5, %v881
    %v883 = vmul.f32 %v878, %v882
    %vm884 = vweird.f32 %v867
    %vm885 = vweird.f32 %v878
    %vm886 = vmor %vm884, %vm885
    %v887 = vsel %vm886, %v878, %v883
    %v888 = vmul.f32 %v854, %v877
    %v889 = vmul.f32 %v855, %v887
    %v891 = vperm.slane %v844, 0
    %v893 = vmul.f32 %v888, %v891
    %v894 = vmul.f32 %v889, %v891
    %v896 = vperm.slane %v845, 0
    %v898 = vadd.f32 %v893, %v896
    %v899 = vadd.f32 %v894, %v896
    %v900 = vld [vmem:[%s13] sm:$0xff]
    %v901 = vld [vmem:[%s13 + $0x8] sm:$0xff]
    %v902 = vld [vmem:[%s13 + $0x10] sm:$0xff]
    %v903 = vld [vmem:[%s13 + $0x18] sm:$0xff]
    %v904 = vld [vmem:[%s14] sm:$0x1]
    %v906 = vperm.slane %v904, 0
    %v909 = vsel %vm91, %v898, 0
    %v912 = vsel %vm91, %v899, 0
    %914 = vmatpush.msra.mxu0 0.0
    %915 = vmatpush.msra.mxu0 0.0
    %916 = vmatpush.msra.mxu0 0.0
    %917 = vmatpush.msra.mxu0 0.0
    %918 = vmatpush.msra.mxu0 0.0
    %919 = vmatpush.msra.mxu0 0.0
    %920 = vmatpush.msra.mxu0 0.0
    %921 = vmatpush.msra.mxu0 0.0
    %922 = vmatpush.msra.mxu0 0.0
    %923 = vmatpush.msra.mxu0 0.0
    %924 = vmatpush.msra.mxu0 0.0
    %925 = vmatpush.msra.mxu0 0.0
    %926 = vmatpush.msra.mxu0 %v903
    %927 = vmatpush.msra.mxu0 %v902
    %928 = vmatpush.msra.mxu0 %v901
    %929 = vmatpush.msra.mxu0 %v900
    %930 = vmatmul.f32.gmra.mxu0 %v909
    %v931 = vpop.f32.mrf.mxu0
    %v932 = vadd.f32 %v906, %v931
    %933 = vmatmul.f32.gmra.mxu0 %v912
    %v934 = vpop.f32.mrf.mxu0
    %v935 = vadd.f32 %v906, %v934
    %936 = vdwg.mxu0
    %v937 = vmul.f32 %v932, 0.5
    %v938 = vmul.f32 %v935, 0.5
    %v939 = vmul.f32 %v932, 0.70710677
    %v940 = vmul.f32 %v935, 0.70710677
    %v941 = vand.u32 2147483647, %v939
    %v942 = vand.u32 2147483647, %v940
    %v943 = vmul.f32 %v941, 0.3275911
    %v944 = vmul.f32 %v942, 0.3275911
    %v945 = vadd.f32 %v943, 1.0
    %v946 = vadd.f32 %v944, 1.0
    %v947 = vrcp.pop %v945
    %v948 = vrcp.pop %v946
    %v949 = vmul.f32 %v947, 1.0614054
    %v950 = vmul.f32 %v948, 1.0614054
    %v951 = vadd.f32 %v949, -1.4531521
    %v952 = vadd.f32 %v950, -1.4531521
    %v953 = vmul.f32 %v951, %v947
    %v954 = vmul.f32 %v952, %v948
    %v955 = vadd.f32 %v953, 1.4214138
    %v956 = vadd.f32 %v954, 1.4214138
    %v957 = vmul.f32 %v955, %v947
    %v958 = vmul.f32 %v956, %v948
    %v959 = vadd.f32 %v957, -0.28449672
    %v960 = vadd.f32 %v958, -0.28449672
    %v961 = vmul.f32 %v959, %v947
    %v962 = vmul.f32 %v960, %v948
    %v963 = vadd.f32 %v961, 0.2548296
    %v964 = vadd.f32 %v962, 0.2548296
    %v965 = vmul.f32 %v963, %v947
    %v966 = vmul.f32 %v964, %v948
    %v967 = vsub.f32 0.0, %v941
    %v968 = vsub.f32 0.0, %v942
    %v969 = vmul.f32 %v967, %v941
    %v970 = vmul.f32 %v968, %v942
    %v971 = vmul.f32 %v969, 1.442695
    %v972 = vpow.pop %v971
    %v973 = vmul.f32 %v970, 1.442695
    %v974 = vpow.pop %v973
    %v975 = vmul.f32 %v965, %v972
    %v976 = vmul.f32 %v966, %v974
    %v977 = vsub.f32 1.0, %v975
    %v978 = vsub.f32 1.0, %v976
    %vm979 = vcmp.ge.f32.partialorder %v939, 0.0
    %vm980 = vcmp.ge.f32.partialorder %v940, 0.0
    %v981 = vsub.f32 0.0, %v977
    %v982 = vsub.f32 0.0, %v978
    %v983 = vsel %vm979, %v977, %v981
    %v984 = vsel %vm980, %v978, %v982
    %v985 = vadd.f32 %v983, 1.0
    %v986 = vadd.f32 %v984, 1.0
    %v987 = vmul.f32 %v937, %v985
    %v988 = vmul.f32 %v938, %v986
    %v989 = vld [vmem:[%s15] sm:$0xff]
    %v990 = vld [vmem:[%s15 + $0x8] sm:$0xff]
    %v991 = vld [vmem:[%s15 + $0x10] sm:$0xff]
    %v992 = vld [vmem:[%s15 + $0x18] sm:$0xff]
    %v993 = vld [vmem:[%s15 + $0x20] sm:$0xff]
    %v994 = vld [vmem:[%s15 + $0x28] sm:$0xff]
    %v995 = vld [vmem:[%s15 + $0x30] sm:$0xff]
    %v996 = vld [vmem:[%s15 + $0x38] sm:$0xff]
    %v997 = vld [vmem:[%s15 + $0x40] sm:$0xff]
    %v998 = vld [vmem:[%s15 + $0x48] sm:$0xff]
    %v999 = vld [vmem:[%s15 + $0x50] sm:$0xff]
    %v1000 = vld [vmem:[%s15 + $0x58] sm:$0xff]
    %v1001 = vld [vmem:[%s15 + $0x60] sm:$0xff]
    %v1002 = vld [vmem:[%s15 + $0x68] sm:$0xff]
    %v1003 = vld [vmem:[%s15 + $0x70] sm:$0xff]
    %v1004 = vld [vmem:[%s15 + $0x78] sm:$0xff]
    %v1005 = vld [vmem:[%s16] sm:$0x1]
    %v1007 = vperm.slane %v1005, 0
    %1009 = vmatpush.msra.mxu0 %v1004
    %1010 = vmatpush.msra.mxu0 %v1003
    %1011 = vmatpush.msra.mxu0 %v1002
    %1012 = vmatpush.msra.mxu0 %v1001
    %1013 = vmatpush.msra.mxu0 %v1000
    %1014 = vmatpush.msra.mxu0 %v999
    %1015 = vmatpush.msra.mxu0 %v998
    %1016 = vmatpush.msra.mxu0 %v997
    %1017 = vmatpush.msra.mxu0 %v996
    %1018 = vmatpush.msra.mxu0 %v995
    %1019 = vmatpush.msra.mxu0 %v994
    %1020 = vmatpush.msra.mxu0 %v993
    %1021 = vmatpush.msra.mxu0 %v992
    %1022 = vmatpush.msra.mxu0 %v991
    %1023 = vmatpush.msra.mxu0 %v990
    %1024 = vmatpush.msra.mxu0 %v989
    %1025 = vmatmul.f32.gmra.mxu0 %v987
    %v1026 = vpop.f32.mrf.mxu0
    %v1027 = vadd.f32 %v1007, %v1026
    %1028 = vmatmul.f32.gmra.mxu0 %v988
    %v1029 = vpop.f32.mrf.mxu0
    %v1030 = vadd.f32 %v1007, %v1029
    %1031 = vdwg.mxu0
    %v1032 = vadd.f32 %v842, %v1027
    %v1033 = vadd.f32 %v843, %v1030
    %1034 = vst.msk [vmem:[#allocation7] sm:$0xff] %vm91, %v1032
    %1035 = vst.msk [vmem:[#allocation7 + $0x8] sm:$0xff] %vm91, %v1033
    // Predicated region
    $region78: #{tpu_custom_call.1} parent=1 // pred_check
      _
    $region79: #{tpu_custom_call.1} parent=1 // pred_check_branch
      %1037 = sbr.rel (0) target = $region81
    $region80: #{tpu_custom_call.1} parent=1 // pred_region
      %1039 = vsyncadd [#allocation4], 0
      %s1040 = sshll.u32 [#allocation7], 4
      %s1041 = int_to_ptr.vmem [resolvable:$true] %s1040
      %s1042 = sshll.u32 %s17, 4
      %s1043 = int_to_ptr.hbm [resolvable:$true] %s1042
      %1048 = dma.vmem_to_hbm [thread:$0]  %s1041, 256, %s1043, [#allocation4], 128, 128, 8
    $region81: #{tpu_custom_call.1} parent=1 // pred_fallthru
      _
    // Predicated region
    $region82: #{tpu_custom_call.1} parent=1 // pred_check
      _
    $region83: #{tpu_custom_call.1} parent=1 // pred_check_branch
      %1050 = sbr.rel (0) target = $region85
    $region84: #{tpu_custom_call.1} parent=1 // pred_region
      %1052 = dma.done [#allocation4], 256
    $region85: #{tpu_custom_call.1} parent=1 // pred_fallthru
      _
    %1053 = vsyncpa [#allocation3], 1
    %1054 = vsyncpa [#allocation6], 1
    %1055 = vsyncpa [#allocation4], 1

</llo_original>
